<compile_context>
chip_gen: v5e
topology: v5e:2x2
jax: 0.10.0
libtpu: 0.0.40
codegen_flags: <defaults>
</compile_context>

<pallas_src>
import math
import functools

import jax
import jax.numpy as jnp
from jax import lax
from jax.experimental import pallas as pl
from jax.experimental.pallas import tpu as pltpu

# ---- small, forward-consistent configuration (scaled-down from the spec) ----
VOCAB_SIZE = 16          # len(vocab)
D_MODEL = 32
NHEAD = 4
NUM_LAYERS = 2
DIM_FF = 64              # scaled-down dim_feedforward
MAX_LEN = 16
LN_EPS = 1e-5
BATCH = 2
SEQ = 8

EMB_ROWS_PAD = 32        # (VOCAB_SIZE + 1) padded up for clean MXU shapes
HEAD_PAD = 128           # MLM-head output columns padded to a full lane width
NUM_BVEC = 9             # packed rows: bq, bk, bv, bo, g1, be1, b2, g2, be2


# ----------------------------------------------------------------------------
# Pallas kernel (entire forward for ONE sequence; grid iterates over batch)
# ----------------------------------------------------------------------------
def _layer_norm(x, gamma, beta, eps=LN_EPS):
    mu = jnp.mean(x, axis=-1, keepdims=True)
    xc = x - mu
    var = jnp.mean(xc * xc, axis=-1, keepdims=True)
    return xc * lax.rsqrt(var + eps) * gamma + beta


def fused_forward_kernel(tok_ref, emb_ref, pe_ref,
                         w_attn_ref, w1_ref, w2_ref,
                         bvec_ref, b1_ref, wh_ref, bh_ref,
                         o_ref, ctx_ref,
                         *, nhead, num_layers, seq):
    f32 = jnp.float32
    bf16 = jnp.bfloat16
    D = emb_ref.shape[1]
    dh = D // nhead
    scale = 1.0 / math.sqrt(dh)

    # ---- embedding lookup as an exact one-hot matmul (gather-free) ----
    tok = tok_ref[...]                                              # (S, 1) i32
    emb_rows = emb_ref.shape[0]
    onehot = (tok == lax.broadcasted_iota(jnp.int32, (seq, emb_rows), 1)
              ).astype(bf16)
    x = jnp.dot(onehot, emb_ref[...], preferred_element_type=f32)   # (S, D) f32

    # ---- positional encoding: broadcast add over this sequence ----
    x = x + pe_ref[0:seq, :]

    # ---- encoder layers (static unroll; weights stacked on layer axis) ----
    for l in range(num_layers):
        b_all = bvec_ref[l]                                         # (9, D) f32

        # separate Q/K/V projections (no (S, 3D) re-slicing)
        x16 = x.astype(bf16)
        q = jnp.dot(x16, w_attn_ref[l, 0], preferred_element_type=f32) + b_all[0:1, :]
        k = jnp.dot(x16, w_attn_ref[l, 1], preferred_element_type=f32) + b_all[1:2, :]
        v = jnp.dot(x16, w_attn_ref[l, 2], preferred_element_type=f32) + b_all[2:3, :]
        q16 = q.astype(bf16)
        k16 = k.astype(bf16)
        v16 = v.astype(bf16)

        # per-head attention; PV results written into VMEM scratch (no concat)
        for h in range(nhead):
            sl = slice(h * dh, (h + 1) * dh)
            s = lax.dot_general(q16[:, sl], k16[:, sl],
                                (((1,), (1,)), ((), ())),
                                preferred_element_type=f32) * scale  # (S, S)
            s = s - jnp.max(s, axis=-1, keepdims=True)
            e = jnp.exp(s)
            denom = jnp.sum(e, axis=-1, keepdims=True)
            p = e * pl.reciprocal(denom, approx=True)
            ctx_ref[:, sl] = jnp.dot(p.astype(bf16), v16[:, sl],
                                     preferred_element_type=f32)     # (S, dh)

        attn = (jnp.dot(ctx_ref[...].astype(bf16), w_attn_ref[l, 3],
                        preferred_element_type=f32) + b_all[3:4, :])

        # residual + LayerNorm 1 (f32)
        x = _layer_norm(x + attn, b_all[4:5, :], b_all[5:6, :])

        # feed-forward: Linear -> ReLU -> Linear
        # TODO(synk): dropout layers are identity in eval mode; not implemented.
        h1 = (jnp.dot(x.astype(bf16), w1_ref[l],
                      preferred_element_type=f32) + b1_ref[l])
        h1 = jnp.maximum(h1, 0.0)
        ff = (jnp.dot(h1.astype(bf16), w2_ref[l],
                      preferred_element_type=f32) + b_all[6:7, :])

        # residual + LayerNorm 2 (f32)
        x = _layer_norm(x + ff, b_all[7:8, :], b_all[8:9, :])

    # ---- MLM head (output columns padded to 128 -> lane-dense store) ----
    logits = (jnp.dot(x.astype(bf16), wh_ref[...],
                      preferred_element_type=f32) + bh_ref[...])     # (S, 128)
    o_ref[...] = logits


# ----------------------------------------------------------------------------
# Parameter construction (deterministic, synthetic; bf16 matmul weights)
# ----------------------------------------------------------------------------
def positional_encoding(max_len, d_model):
    position = jnp.arange(max_len, dtype=jnp.float32)[:, None]
    div_term = jnp.exp(jnp.arange(0, d_model, 2, dtype=jnp.float32)
                       * (-math.log(10000.0) / d_model))
    pe = jnp.zeros((max_len, d_model), jnp.float32)
    pe = pe.at[:, 0::2].set(jnp.sin(position * div_term))
    pe = pe.at[:, 1::2].set(jnp.cos(position * div_term))
    return pe


def init_params(key):
    def nrm(k, shape, scale=0.02):
        return (scale * jax.random.normal(k, shape)).astype(jnp.float32)

    keys = jax.random.split(key, 2 + NUM_LAYERS)

    emb = jnp.zeros((EMB_ROWS_PAD, D_MODEL), jnp.float32)
    emb = emb.at[:VOCAB_SIZE + 1].set(nrm(keys[0], (VOCAB_SIZE + 1, D_MODEL)))

    w_head = jnp.zeros((D_MODEL, HEAD_PAD), jnp.float32)
    w_head = w_head.at[:, :VOCAB_SIZE].set(nrm(keys[1], (D_MODEL, VOCAB_SIZE)))

    w_attn, w1, w2, bvec, b1 = [], [], [], [], []
    zeros_d = jnp.zeros((D_MODEL,), jnp.float32)
    ones_d = jnp.ones((D_MODEL,), jnp.float32)
    for li in range(NUM_LAYERS):
        lk = jax.random.split(keys[2 + li], 6)
        w_attn.append(jnp.stack([nrm(lk[0], (D_MODEL, D_MODEL)),   # Wq
                                 nrm(lk[1], (D_MODEL, D_MODEL)),   # Wk
                                 nrm(lk[2], (D_MODEL, D_MODEL)),   # Wv
                                 nrm(lk[3], (D_MODEL, D_MODEL))]))  # Wo
        w1.append(nrm(lk[4], (D_MODEL, DIM_FF)))
        w2.append(nrm(lk[5], (DIM_FF, D_MODEL)))
        # packed rows: bq, bk, bv, bo, gamma1, beta1, b2, gamma2, beta2
        bvec.append(jnp.stack([zeros_d, zeros_d, zeros_d, zeros_d,
                               ones_d, zeros_d,
                               zeros_d,
                               ones_d, zeros_d]))
        b1.append(jnp.zeros((1, DIM_FF), jnp.float32))

    return {
        "embedding": emb.astype(jnp.bfloat16),
        "pe": positional_encoding(MAX_LEN, D_MODEL),
        "w_attn": jnp.stack(w_attn, axis=0).astype(jnp.bfloat16),
        "w1": jnp.stack(w1, axis=0).astype(jnp.bfloat16),
        "w2": jnp.stack(w2, axis=0).astype(jnp.bfloat16),
        "bvec": jnp.stack(bvec, axis=0),
        "b1": jnp.stack(b1, axis=0),
        "w_head": w_head.astype(jnp.bfloat16),
        "b_head": jnp.zeros((1, HEAD_PAD), jnp.float32),
    }


# ----------------------------------------------------------------------------
# Full model forward: ONE fused pallas_call, grid over batch (parallel)
# ----------------------------------------------------------------------------
@jax.jit
def model_forward(tokens, params):
    B, S = tokens.shape
    tok2 = tokens.reshape(B * S, 1).astype(jnp.int32)

    kernel = functools.partial(fused_forward_kernel, nhead=NHEAD,
                               num_layers=NUM_LAYERS, seq=S)

    in_specs = [
        pl.BlockSpec((S, 1), lambda b: (b, 0)),                        # tokens
        pl.BlockSpec((EMB_ROWS_PAD, D_MODEL), lambda b: (0, 0)),       # embedding
        pl.BlockSpec((MAX_LEN, D_MODEL), lambda b: (0, 0)),            # pe
        pl.BlockSpec((NUM_LAYERS, 4, D_MODEL, D_MODEL),
                     lambda b: (0, 0, 0, 0)),                          # Wq/Wk/Wv/Wo
        pl.BlockSpec((NUM_LAYERS, D_MODEL, DIM_FF), lambda b: (0, 0, 0)),  # W1
        pl.BlockSpec((NUM_LAYERS, DIM_FF, D_MODEL), lambda b: (0, 0, 0)),  # W2
        pl.BlockSpec((NUM_LAYERS, NUM_BVEC, D_MODEL), lambda b: (0, 0, 0)),  # biases+LN
        pl.BlockSpec((NUM_LAYERS, 1, DIM_FF), lambda b: (0, 0, 0)),    # b1
        pl.BlockSpec((D_MODEL, HEAD_PAD), lambda b: (0, 0)),           # W_head
        pl.BlockSpec((1, HEAD_PAD), lambda b: (0, 0)),                 # b_head
    ]
    out_specs = pl.BlockSpec((S, HEAD_PAD), lambda b: (b, 0))

    out = pl.pallas_call(
        kernel,
        grid=(B,),
        in_specs=in_specs,
        out_specs=out_specs,
        out_shape=jax.ShapeDtypeStruct((B * S, HEAD_PAD), jnp.float32),
        scratch_shapes=[pltpu.VMEM((S, D_MODEL), jnp.float32)],
        compiler_params=pltpu.CompilerParams(
            dimension_semantics=("parallel",)),
    )(tok2, params["embedding"], params["pe"],
      params["w_attn"], params["w1"], params["w2"],
      params["bvec"], params["b1"],
      params["w_head"], params["b_head"])

    return out[:, :VOCAB_SIZE].reshape(B, S, VOCAB_SIZE)


if __name__ == "__main__":
    key = jax.random.PRNGKey(0)
    k_tok, k_par = jax.random.split(key)
    tokens = jax.random.randint(k_tok, (BATCH, SEQ), 0, VOCAB_SIZE + 1,
                                dtype=jnp.int32)
    params = init_params(k_par)

    logits = model_forward(tokens, params)
    jax.block_until_ready(logits)
    assert logits.shape == (BATCH, SEQ, VOCAB_SIZE)
    assert bool(jnp.all(jnp.isfinite(logits)))
    print("KERNEL_OK")
</pallas_src>

<mosaic_0001>
module attributes {stable_mosaic.version = 11 : i64} {
  func.func @fused_forward_kernel(%arg0: i32, %arg1: memref<8x1xi32, #tpu.memory_space<vmem>>, %arg2: memref<32x32xbf16, #tpu.memory_space<vmem>>, %arg3: memref<16x32xf32, #tpu.memory_space<vmem>>, %arg4: memref<2x4x32x32xbf16, #tpu.memory_space<vmem>>, %arg5: memref<2x32x64xbf16, #tpu.memory_space<vmem>>, %arg6: memref<2x64x32xbf16, #tpu.memory_space<vmem>>, %arg7: memref<2x9x32xf32, #tpu.memory_space<vmem>>, %arg8: memref<2x1x64xf32, #tpu.memory_space<vmem>>, %arg9: memref<32x128xbf16, #tpu.memory_space<vmem>>, %arg10: memref<1x128xf32, #tpu.memory_space<vmem>>, %arg11: memref<8x128xf32, #tpu.memory_space<vmem>>, %arg12: memref<8x32xf32, #tpu.memory_space<vmem>>) attributes {dimension_semantics = [#tpu.dimension_semantics<parallel>], iteration_bounds = array<i64: 2>, scalar_prefetch = 0 : i64, scratch_operands = 1 : i64, tpu.core_type = #tpu.core_type<tc>, window_params = [{transform_indices = @transform_0, window_bounds = array<i64: 8, 1>}, {pipeline_mode = #tpu.pipeline_mode<synchronous>, transform_indices = @transform_1, window_bounds = array<i64: 32, 32>}, {pipeline_mode = #tpu.pipeline_mode<synchronous>, transform_indices = @transform_2, window_bounds = array<i64: 16, 32>}, {pipeline_mode = #tpu.pipeline_mode<synchronous>, transform_indices = @transform_3, window_bounds = array<i64: 2, 4, 32, 32>}, {pipeline_mode = #tpu.pipeline_mode<synchronous>, transform_indices = @transform_4, window_bounds = array<i64: 2, 32, 64>}, {pipeline_mode = #tpu.pipeline_mode<synchronous>, transform_indices = @transform_5, window_bounds = array<i64: 2, 64, 32>}, {pipeline_mode = #tpu.pipeline_mode<synchronous>, transform_indices = @transform_6, window_bounds = array<i64: 2, 9, 32>}, {pipeline_mode = #tpu.pipeline_mode<synchronous>, transform_indices = @transform_7, window_bounds = array<i64: 2, 1, 64>}, {pipeline_mode = #tpu.pipeline_mode<synchronous>, transform_indices = @transform_8, window_bounds = array<i64: 32, 128>}, {pipeline_mode = #tpu.pipeline_mode<synchronous>, transform_indices = @transform_9, window_bounds = array<i64: 1, 128>}, {transform_indices = @transform_10, window_bounds = array<i64: 8, 128>}]} {
    %c0 = arith.constant 0 : index
    %c0_0 = arith.constant 0 : index
    %0 = vector.load %arg1[%c0, %c0_0] : memref<8x1xi32, #tpu.memory_space<vmem>>, vector<8x1xi32>
    %1 = tpu.iota {dimensions = array<i32: 1>} : vector<8x32xi32>
    %2 = vector.broadcast %0 : vector<8x1xi32> to vector<8x32xi32>
    %3 = arith.cmpi eq, %2, %1 : vector<8x32xi32>
    %4 = arith.extui %3 : vector<8x32xi1> to vector<8x32xi32>
    %5 = arith.sitofp %4 : vector<8x32xi32> to vector<8x32xf32>
    %6 = arith.truncf %5 : vector<8x32xf32> to vector<8x32xbf16>
    %c0_1 = arith.constant 0 : index
    %c0_2 = arith.constant 0 : index
    %7 = vector.load %arg2[%c0_1, %c0_2] : memref<32x32xbf16, #tpu.memory_space<vmem>>, vector<32x32xbf16>
    %cst = arith.constant dense<0.000000e+00> : vector<8x32xf32>
    %8 = tpu.matmul %6, %7, %cst {dimension_numbers = #tpu.dot_dimension_numbers<[1], [0], [0], [1], [0, 0, 1, 1], [], []>} : vector<8x32xbf16>, vector<32x32xbf16>, vector<8x32xf32> -> vector<8x32xf32>
    %c0_3 = arith.constant 0 : index
    %c0_4 = arith.constant 0 : index
    %9 = vector.load %arg3[%c0_3, %c0_4] : memref<16x32xf32, #tpu.memory_space<vmem>>, vector<8x32xf32>
    %10 = arith.addf %8, %9 : vector<8x32xf32>
    %c0_5 = arith.constant 0 : index
    %c0_6 = arith.constant 0 : index
    %c0_7 = arith.constant 0 : index
    %11 = vector.load %arg7[%c0_5, %c0_6, %c0_7] : memref<2x9x32xf32, #tpu.memory_space<vmem>>, vector<1x9x32xf32>
    %12 = vector.shape_cast %11 : vector<1x9x32xf32> to vector<9x32xf32>
    %13 = arith.truncf %10 : vector<8x32xf32> to vector<8x32xbf16>
    %c0_8 = arith.constant 0 : index
    %c0_9 = arith.constant 0 : index
    %c0_10 = arith.constant 0 : index
    %c0_11 = arith.constant 0 : index
    %14 = vector.load %arg4[%c0_8, %c0_9, %c0_10, %c0_11] : memref<2x4x32x32xbf16, #tpu.memory_space<vmem>>, vector<1x1x32x32xbf16>
    %15 = vector.shape_cast %14 : vector<1x1x32x32xbf16> to vector<32x32xbf16>
    %cst_12 = arith.constant dense<0.000000e+00> : vector<8x32xf32>
    %16 = tpu.matmul %13, %15, %cst_12 {dimension_numbers = #tpu.dot_dimension_numbers<[1], [0], [0], [1], [0, 0, 1, 1], [], []>} : vector<8x32xbf16>, vector<32x32xbf16>, vector<8x32xf32> -> vector<8x32xf32>
    %17 = vector.extract_strided_slice %12 {offsets = [0, 0], sizes = [1, 32], strides = [1, 1]} : vector<9x32xf32> to vector<1x32xf32>
    %18 = vector.broadcast %17 : vector<1x32xf32> to vector<8x32xf32>
    %19 = arith.addf %16, %18 : vector<8x32xf32>
    %c0_13 = arith.constant 0 : index
    %c1 = arith.constant 1 : index
    %c0_14 = arith.constant 0 : index
    %c0_15 = arith.constant 0 : index
    %20 = vector.load %arg4[%c0_13, %c1, %c0_14, %c0_15] : memref<2x4x32x32xbf16, #tpu.memory_space<vmem>>, vector<1x1x32x32xbf16>
    %21 = vector.shape_cast %20 : vector<1x1x32x32xbf16> to vector<32x32xbf16>
    %cst_16 = arith.constant dense<0.000000e+00> : vector<8x32xf32>
    %22 = tpu.matmul %13, %21, %cst_16 {dimension_numbers = #tpu.dot_dimension_numbers<[1], [0], [0], [1], [0, 0, 1, 1], [], []>} : vector<8x32xbf16>, vector<32x32xbf16>, vector<8x32xf32> -> vector<8x32xf32>
    %23 = vector.extract_strided_slice %12 {offsets = [1, 0], sizes = [1, 32], strides = [1, 1]} : vector<9x32xf32> to vector<1x32xf32>
    %24 = vector.broadcast %23 : vector<1x32xf32> to vector<8x32xf32>
    %25 = arith.addf %22, %24 : vector<8x32xf32>
    %c0_17 = arith.constant 0 : index
    %c2 = arith.constant 2 : index
    %c0_18 = arith.constant 0 : index
    %c0_19 = arith.constant 0 : index
    %26 = vector.load %arg4[%c0_17, %c2, %c0_18, %c0_19] : memref<2x4x32x32xbf16, #tpu.memory_space<vmem>>, vector<1x1x32x32xbf16>
    %27 = vector.shape_cast %26 : vector<1x1x32x32xbf16> to vector<32x32xbf16>
    %cst_20 = arith.constant dense<0.000000e+00> : vector<8x32xf32>
    %28 = tpu.matmul %13, %27, %cst_20 {dimension_numbers = #tpu.dot_dimension_numbers<[1], [0], [0], [1], [0, 0, 1, 1], [], []>} : vector<8x32xbf16>, vector<32x32xbf16>, vector<8x32xf32> -> vector<8x32xf32>
    %29 = vector.extract_strided_slice %12 {offsets = [2, 0], sizes = [1, 32], strides = [1, 1]} : vector<9x32xf32> to vector<1x32xf32>
    %30 = vector.broadcast %29 : vector<1x32xf32> to vector<8x32xf32>
    %31 = arith.addf %28, %30 : vector<8x32xf32>
    %32 = arith.truncf %19 : vector<8x32xf32> to vector<8x32xbf16>
    %33 = arith.truncf %25 : vector<8x32xf32> to vector<8x32xbf16>
    %34 = arith.truncf %31 : vector<8x32xf32> to vector<8x32xbf16>
    %35 = vector.extract_strided_slice %32 {offsets = [0, 0], sizes = [8, 8], strides = [1, 1]} : vector<8x32xbf16> to vector<8x8xbf16>
    %36 = vector.extract_strided_slice %33 {offsets = [0, 0], sizes = [8, 8], strides = [1, 1]} : vector<8x32xbf16> to vector<8x8xbf16>
    %cst_21 = arith.constant dense<0.000000e+00> : vector<8x8xf32>
    %37 = tpu.matmul %35, %36, %cst_21 {dimension_numbers = #tpu.dot_dimension_numbers<[1], [1], [0], [0], [0, 0, 1, 0], [], []>} : vector<8x8xbf16>, vector<8x8xbf16>, vector<8x8xf32> -> vector<8x8xf32>
    %cst_22 = arith.constant 0.353553385 : f32
    %38 = vector.broadcast %cst_22 : f32 to vector<8x8xf32>
    %39 = arith.mulf %37, %38 : vector<8x8xf32>
    %cst_23 = arith.constant dense<0xFF800000> : vector<8xf32>
    %40 = vector.multi_reduction <maximumf>, %39, %cst_23 [1] : vector<8x8xf32> to vector<8xf32>
    %41 = vector.shape_cast %40 : vector<8xf32> to vector<8x1xf32>
    %42 = vector.broadcast %41 : vector<8x1xf32> to vector<8x8xf32>
    %43 = arith.subf %39, %42 : vector<8x8xf32>
    %44 = math.exp %43 : vector<8x8xf32>
    %cst_24 = arith.constant dense<0.000000e+00> : vector<8xf32>
    %45 = vector.multi_reduction <add>, %44, %cst_24 [1] : vector<8x8xf32> to vector<8xf32>
    %46 = vector.shape_cast %45 : vector<8xf32> to vector<8x1xf32>
    %47 = tpu.reciprocal %46 {approx = true} : vector<8x1xf32> -> vector<8x1xf32>
    %48 = vector.broadcast %47 : vector<8x1xf32> to vector<8x8xf32>
    %49 = arith.mulf %44, %48 : vector<8x8xf32>
    %50 = arith.truncf %49 : vector<8x8xf32> to vector<8x8xbf16>
    %51 = vector.extract_strided_slice %34 {offsets = [0, 0], sizes = [8, 8], strides = [1, 1]} : vector<8x32xbf16> to vector<8x8xbf16>
    %cst_25 = arith.constant dense<0.000000e+00> : vector<8x8xf32>
    %52 = tpu.matmul %50, %51, %cst_25 {dimension_numbers = #tpu.dot_dimension_numbers<[1], [0], [0], [1], [0, 0, 1, 1], [], []>} : vector<8x8xbf16>, vector<8x8xbf16>, vector<8x8xf32> -> vector<8x8xf32>
    %c0_26 = arith.constant 0 : index
    %c0_27 = arith.constant 0 : index
    %53 = vector.load %arg12[%c0_26, %c0_27] : memref<8x32xf32, #tpu.memory_space<vmem>>, vector<8x8xf32>
    tpu.vector_store %arg12[%c0_26, %c0_27], %52 {strides = array<i32>} : memref<8x32xf32, #tpu.memory_space<vmem>>, vector<8x8xf32>,
    %54 = vector.extract_strided_slice %32 {offsets = [0, 8], sizes = [8, 8], strides = [1, 1]} : vector<8x32xbf16> to vector<8x8xbf16>
    %55 = vector.extract_strided_slice %33 {offsets = [0, 8], sizes = [8, 8], strides = [1, 1]} : vector<8x32xbf16> to vector<8x8xbf16>
    %cst_28 = arith.constant dense<0.000000e+00> : vector<8x8xf32>
    %56 = tpu.matmul %54, %55, %cst_28 {dimension_numbers = #tpu.dot_dimension_numbers<[1], [1], [0], [0], [0, 0, 1, 0], [], []>} : vector<8x8xbf16>, vector<8x8xbf16>, vector<8x8xf32> -> vector<8x8xf32>
    %cst_29 = arith.constant 0.353553385 : f32
    %57 = vector.broadcast %cst_29 : f32 to vector<8x8xf32>
    %58 = arith.mulf %56, %57 : vector<8x8xf32>
    %cst_30 = arith.constant dense<0xFF800000> : vector<8xf32>
    %59 = vector.multi_reduction <maximumf>, %58, %cst_30 [1] : vector<8x8xf32> to vector<8xf32>
    %60 = vector.shape_cast %59 : vector<8xf32> to vector<8x1xf32>
    %61 = vector.broadcast %60 : vector<8x1xf32> to vector<8x8xf32>
    %62 = arith.subf %58, %61 : vector<8x8xf32>
    %63 = math.exp %62 : vector<8x8xf32>
    %cst_31 = arith.constant dense<0.000000e+00> : vector<8xf32>
    %64 = vector.multi_reduction <add>, %63, %cst_31 [1] : vector<8x8xf32> to vector<8xf32>
    %65 = vector.shape_cast %64 : vector<8xf32> to vector<8x1xf32>
    %66 = tpu.reciprocal %65 {approx = true} : vector<8x1xf32> -> vector<8x1xf32>
    %67 = vector.broadcast %66 : vector<8x1xf32> to vector<8x8xf32>
    %68 = arith.mulf %63, %67 : vector<8x8xf32>
    %69 = arith.truncf %68 : vector<8x8xf32> to vector<8x8xbf16>
    %70 = vector.extract_strided_slice %34 {offsets = [0, 8], sizes = [8, 8], strides = [1, 1]} : vector<8x32xbf16> to vector<8x8xbf16>
    %cst_32 = arith.constant dense<0.000000e+00> : vector<8x8xf32>
    %71 = tpu.matmul %69, %70, %cst_32 {dimension_numbers = #tpu.dot_dimension_numbers<[1], [0], [0], [1], [0, 0, 1, 1], [], []>} : vector<8x8xbf16>, vector<8x8xbf16>, vector<8x8xf32> -> vector<8x8xf32>
    %c0_33 = arith.constant 0 : index
    %c8 = arith.constant 8 : index
    %72 = vector.load %arg12[%c0_33, %c8] : memref<8x32xf32, #tpu.memory_space<vmem>>, vector<8x8xf32>
    tpu.vector_store %arg12[%c0_33, %c8], %71 {strides = array<i32>} : memref<8x32xf32, #tpu.memory_space<vmem>>, vector<8x8xf32>,
    %73 = vector.extract_strided_slice %32 {offsets = [0, 16], sizes = [8, 8], strides = [1, 1]} : vector<8x32xbf16> to vector<8x8xbf16>
    %74 = vector.extract_strided_slice %33 {offsets = [0, 16], sizes = [8, 8], strides = [1, 1]} : vector<8x32xbf16> to vector<8x8xbf16>
    %cst_34 = arith.constant dense<0.000000e+00> : vector<8x8xf32>
    %75 = tpu.matmul %73, %74, %cst_34 {dimension_numbers = #tpu.dot_dimension_numbers<[1], [1], [0], [0], [0, 0, 1, 0], [], []>} : vector<8x8xbf16>, vector<8x8xbf16>, vector<8x8xf32> -> vector<8x8xf32>
    %cst_35 = arith.constant 0.353553385 : f32
    %76 = vector.broadcast %cst_35 : f32 to vector<8x8xf32>
    %77 = arith.mulf %75, %76 : vector<8x8xf32>
    %cst_36 = arith.constant dense<0xFF800000> : vector<8xf32>
    %78 = vector.multi_reduction <maximumf>, %77, %cst_36 [1] : vector<8x8xf32> to vector<8xf32>
    %79 = vector.shape_cast %78 : vector<8xf32> to vector<8x1xf32>
    %80 = vector.broadcast %79 : vector<8x1xf32> to vector<8x8xf32>
    %81 = arith.subf %77, %80 : vector<8x8xf32>
    %82 = math.exp %81 : vector<8x8xf32>
    %cst_37 = arith.constant dense<0.000000e+00> : vector<8xf32>
    %83 = vector.multi_reduction <add>, %82, %cst_37 [1] : vector<8x8xf32> to vector<8xf32>
    %84 = vector.shape_cast %83 : vector<8xf32> to vector<8x1xf32>
    %85 = tpu.reciprocal %84 {approx = true} : vector<8x1xf32> -> vector<8x1xf32>
    %86 = vector.broadcast %85 : vector<8x1xf32> to vector<8x8xf32>
    %87 = arith.mulf %82, %86 : vector<8x8xf32>
    %88 = arith.truncf %87 : vector<8x8xf32> to vector<8x8xbf16>
    %89 = vector.extract_strided_slice %34 {offsets = [0, 16], sizes = [8, 8], strides = [1, 1]} : vector<8x32xbf16> to vector<8x8xbf16>
    %cst_38 = arith.constant dense<0.000000e+00> : vector<8x8xf32>
    %90 = tpu.matmul %88, %89, %cst_38 {dimension_numbers = #tpu.dot_dimension_numbers<[1], [0], [0], [1], [0, 0, 1, 1], [], []>} : vector<8x8xbf16>, vector<8x8xbf16>, vector<8x8xf32> -> vector<8x8xf32>
    %c0_39 = arith.constant 0 : index
    %c16 = arith.constant 16 : index
    %91 = vector.load %arg12[%c0_39, %c16] : memref<8x32xf32, #tpu.memory_space<vmem>>, vector<8x8xf32>
    tpu.vector_store %arg12[%c0_39, %c16], %90 {strides = array<i32>} : memref<8x32xf32, #tpu.memory_space<vmem>>, vector<8x8xf32>,
    %92 = vector.extract_strided_slice %32 {offsets = [0, 24], sizes = [8, 8], strides = [1, 1]} : vector<8x32xbf16> to vector<8x8xbf16>
    %93 = vector.extract_strided_slice %33 {offsets = [0, 24], sizes = [8, 8], strides = [1, 1]} : vector<8x32xbf16> to vector<8x8xbf16>
    %cst_40 = arith.constant dense<0.000000e+00> : vector<8x8xf32>
    %94 = tpu.matmul %92, %93, %cst_40 {dimension_numbers = #tpu.dot_dimension_numbers<[1], [1], [0], [0], [0, 0, 1, 0], [], []>} : vector<8x8xbf16>, vector<8x8xbf16>, vector<8x8xf32> -> vector<8x8xf32>
    %cst_41 = arith.constant 0.353553385 : f32
    %95 = vector.broadcast %cst_41 : f32 to vector<8x8xf32>
    %96 = arith.mulf %94, %95 : vector<8x8xf32>
    %cst_42 = arith.constant dense<0xFF800000> : vector<8xf32>
    %97 = vector.multi_reduction <maximumf>, %96, %cst_42 [1] : vector<8x8xf32> to vector<8xf32>
    %98 = vector.shape_cast %97 : vector<8xf32> to vector<8x1xf32>
    %99 = vector.broadcast %98 : vector<8x1xf32> to vector<8x8xf32>
    %100 = arith.subf %96, %99 : vector<8x8xf32>
    %101 = math.exp %100 : vector<8x8xf32>
    %cst_43 = arith.constant dense<0.000000e+00> : vector<8xf32>
    %102 = vector.multi_reduction <add>, %101, %cst_43 [1] : vector<8x8xf32> to vector<8xf32>
    %103 = vector.shape_cast %102 : vector<8xf32> to vector<8x1xf32>
    %104 = tpu.reciprocal %103 {approx = true} : vector<8x1xf32> -> vector<8x1xf32>
    %105 = vector.broadcast %104 : vector<8x1xf32> to vector<8x8xf32>
    %106 = arith.mulf %101, %105 : vector<8x8xf32>
    %107 = arith.truncf %106 : vector<8x8xf32> to vector<8x8xbf16>
    %108 = vector.extract_strided_slice %34 {offsets = [0, 24], sizes = [8, 8], strides = [1, 1]} : vector<8x32xbf16> to vector<8x8xbf16>
    %cst_44 = arith.constant dense<0.000000e+00> : vector<8x8xf32>
    %109 = tpu.matmul %107, %108, %cst_44 {dimension_numbers = #tpu.dot_dimension_numbers<[1], [0], [0], [1], [0, 0, 1, 1], [], []>} : vector<8x8xbf16>, vector<8x8xbf16>, vector<8x8xf32> -> vector<8x8xf32>
    %c0_45 = arith.constant 0 : index
    %c24 = arith.constant 24 : index
    %110 = vector.load %arg12[%c0_45, %c24] : memref<8x32xf32, #tpu.memory_space<vmem>>, vector<8x8xf32>
    tpu.vector_store %arg12[%c0_45, %c24], %109 {strides = array<i32>} : memref<8x32xf32, #tpu.memory_space<vmem>>, vector<8x8xf32>,
    %c0_46 = arith.constant 0 : index
    %c0_47 = arith.constant 0 : index
    %111 = vector.load %arg12[%c0_46, %c0_47] : memref<8x32xf32, #tpu.memory_space<vmem>>, vector<8x32xf32>
    %112 = arith.truncf %111 : vector<8x32xf32> to vector<8x32xbf16>
    %c0_48 = arith.constant 0 : index
    %c3 = arith.constant 3 : index
    %c0_49 = arith.constant 0 : index
    %c0_50 = arith.constant 0 : index
    %113 = vector.load %arg4[%c0_48, %c3, %c0_49, %c0_50] : memref<2x4x32x32xbf16, #tpu.memory_space<vmem>>, vector<1x1x32x32xbf16>
    %114 = vector.shape_cast %113 : vector<1x1x32x32xbf16> to vector<32x32xbf16>
    %cst_51 = arith.constant dense<0.000000e+00> : vector<8x32xf32>
    %115 = tpu.matmul %112, %114, %cst_51 {dimension_numbers = #tpu.dot_dimension_numbers<[1], [0], [0], [1], [0, 0, 1, 1], [], []>} : vector<8x32xbf16>, vector<32x32xbf16>, vector<8x32xf32> -> vector<8x32xf32>
    %116 = vector.extract_strided_slice %12 {offsets = [3, 0], sizes = [1, 32], strides = [1, 1]} : vector<9x32xf32> to vector<1x32xf32>
    %117 = vector.broadcast %116 : vector<1x32xf32> to vector<8x32xf32>
    %118 = arith.addf %115, %117 : vector<8x32xf32>
    %119 = arith.addf %10, %118 : vector<8x32xf32>
    %120 = vector.extract_strided_slice %12 {offsets = [4, 0], sizes = [1, 32], strides = [1, 1]} : vector<9x32xf32> to vector<1x32xf32>
    %121 = vector.extract_strided_slice %12 {offsets = [5, 0], sizes = [1, 32], strides = [1, 1]} : vector<9x32xf32> to vector<1x32xf32>
    %cst_52 = arith.constant dense<0.000000e+00> : vector<8xf32>
    %122 = vector.multi_reduction <add>, %119, %cst_52 [1] : vector<8x32xf32> to vector<8xf32>
    %123 = vector.shape_cast %122 : vector<8xf32> to vector<8x1xf32>
    %cst_53 = arith.constant 3.200000e+01 : f32
    %124 = vector.broadcast %cst_53 : f32 to vector<8x1xf32>
    %125 = arith.divf %123, %124 : vector<8x1xf32>
    %126 = vector.broadcast %125 : vector<8x1xf32> to vector<8x32xf32>
    %127 = arith.subf %119, %126 : vector<8x32xf32>
    %128 = arith.mulf %127, %127 : vector<8x32xf32>
    %cst_54 = arith.constant dense<0.000000e+00> : vector<8xf32>
    %129 = vector.multi_reduction <add>, %128, %cst_54 [1] : vector<8x32xf32> to vector<8xf32>
    %130 = vector.shape_cast %129 : vector<8xf32> to vector<8x1xf32>
    %cst_55 = arith.constant 3.200000e+01 : f32
    %131 = vector.broadcast %cst_55 : f32 to vector<8x1xf32>
    %132 = arith.divf %130, %131 : vector<8x1xf32>
    %cst_56 = arith.constant 9.99999974E-6 : f32
    %133 = vector.broadcast %cst_56 : f32 to vector<8x1xf32>
    %134 = arith.addf %132, %133 : vector<8x1xf32>
    %135 = math.rsqrt %134 : vector<8x1xf32>
    %136 = vector.broadcast %135 : vector<8x1xf32> to vector<8x32xf32>
    %137 = arith.mulf %127, %136 : vector<8x32xf32>
    %138 = vector.broadcast %120 : vector<1x32xf32> to vector<8x32xf32>
    %139 = arith.mulf %137, %138 : vector<8x32xf32>
    %140 = vector.broadcast %121 : vector<1x32xf32> to vector<8x32xf32>
    %141 = arith.addf %139, %140 : vector<8x32xf32>
    %142 = arith.truncf %141 : vector<8x32xf32> to vector<8x32xbf16>
    %c0_57 = arith.constant 0 : index
    %c0_58 = arith.constant 0 : index
    %c0_59 = arith.constant 0 : index
    %143 = vector.load %arg5[%c0_57, %c0_58, %c0_59] : memref<2x32x64xbf16, #tpu.memory_space<vmem>>, vector<1x32x64xbf16>
    %144 = vector.shape_cast %143 : vector<1x32x64xbf16> to vector<32x64xbf16>
    %cst_60 = arith.constant dense<0.000000e+00> : vector<8x64xf32>
    %145 = tpu.matmul %142, %144, %cst_60 {dimension_numbers = #tpu.dot_dimension_numbers<[1], [0], [0], [1], [0, 0, 1, 1], [], []>} : vector<8x32xbf16>, vector<32x64xbf16>, vector<8x64xf32> -> vector<8x64xf32>
    %c0_61 = arith.constant 0 : index
    %c0_62 = arith.constant 0 : index
    %c0_63 = arith.constant 0 : index
    %146 = vector.load %arg8[%c0_61, %c0_62, %c0_63] : memref<2x1x64xf32, #tpu.memory_space<vmem>>, vector<1x1x64xf32>
    %147 = vector.shape_cast %146 : vector<1x1x64xf32> to vector<1x64xf32>
    %148 = vector.broadcast %147 : vector<1x64xf32> to vector<8x64xf32>
    %149 = arith.addf %145, %148 : vector<8x64xf32>
    %cst_64 = arith.constant 0.000000e+00 : f32
    %150 = vector.broadcast %cst_64 : f32 to vector<8x64xf32>
    %151 = arith.maximumf %149, %150 : vector<8x64xf32>
    %152 = arith.truncf %151 : vector<8x64xf32> to vector<8x64xbf16>
    %c0_65 = arith.constant 0 : index
    %c0_66 = arith.constant 0 : index
    %c0_67 = arith.constant 0 : index
    %153 = vector.load %arg6[%c0_65, %c0_66, %c0_67] : memref<2x64x32xbf16, #tpu.memory_space<vmem>>, vector<1x64x32xbf16>
    %154 = vector.shape_cast %153 : vector<1x64x32xbf16> to vector<64x32xbf16>
    %cst_68 = arith.constant dense<0.000000e+00> : vector<8x32xf32>
    %155 = tpu.matmul %152, %154, %cst_68 {dimension_numbers = #tpu.dot_dimension_numbers<[1], [0], [0], [1], [0, 0, 1, 1], [], []>} : vector<8x64xbf16>, vector<64x32xbf16>, vector<8x32xf32> -> vector<8x32xf32>
    %156 = vector.extract_strided_slice %12 {offsets = [6, 0], sizes = [1, 32], strides = [1, 1]} : vector<9x32xf32> to vector<1x32xf32>
    %157 = vector.broadcast %156 : vector<1x32xf32> to vector<8x32xf32>
    %158 = arith.addf %155, %157 : vector<8x32xf32>
    %159 = arith.addf %141, %158 : vector<8x32xf32>
    %160 = vector.extract_strided_slice %12 {offsets = [7, 0], sizes = [1, 32], strides = [1, 1]} : vector<9x32xf32> to vector<1x32xf32>
    %161 = vector.extract_strided_slice %12 {offsets = [8, 0], sizes = [1, 32], strides = [1, 1]} : vector<9x32xf32> to vector<1x32xf32>
    %cst_69 = arith.constant dense<0.000000e+00> : vector<8xf32>
    %162 = vector.multi_reduction <add>, %159, %cst_69 [1] : vector<8x32xf32> to vector<8xf32>
    %163 = vector.shape_cast %162 : vector<8xf32> to vector<8x1xf32>
    %cst_70 = arith.constant 3.200000e+01 : f32
    %164 = vector.broadcast %cst_70 : f32 to vector<8x1xf32>
    %165 = arith.divf %163, %164 : vector<8x1xf32>
    %166 = vector.broadcast %165 : vector<8x1xf32> to vector<8x32xf32>
    %167 = arith.subf %159, %166 : vector<8x32xf32>
    %168 = arith.mulf %167, %167 : vector<8x32xf32>
    %cst_71 = arith.constant dense<0.000000e+00> : vector<8xf32>
    %169 = vector.multi_reduction <add>, %168, %cst_71 [1] : vector<8x32xf32> to vector<8xf32>
    %170 = vector.shape_cast %169 : vector<8xf32> to vector<8x1xf32>
    %cst_72 = arith.constant 3.200000e+01 : f32
    %171 = vector.broadcast %cst_72 : f32 to vector<8x1xf32>
    %172 = arith.divf %170, %171 : vector<8x1xf32>
    %cst_73 = arith.constant 9.99999974E-6 : f32
    %173 = vector.broadcast %cst_73 : f32 to vector<8x1xf32>
    %174 = arith.addf %172, %173 : vector<8x1xf32>
    %175 = math.rsqrt %174 : vector<8x1xf32>
    %176 = vector.broadcast %175 : vector<8x1xf32> to vector<8x32xf32>
    %177 = arith.mulf %167, %176 : vector<8x32xf32>
    %178 = vector.broadcast %160 : vector<1x32xf32> to vector<8x32xf32>
    %179 = arith.mulf %177, %178 : vector<8x32xf32>
    %180 = vector.broadcast %161 : vector<1x32xf32> to vector<8x32xf32>
    %181 = arith.addf %179, %180 : vector<8x32xf32>
    %c1_74 = arith.constant 1 : index
    %c0_75 = arith.constant 0 : index
    %c0_76 = arith.constant 0 : index
    %182 = vector.load %arg7[%c1_74, %c0_75, %c0_76] : memref<2x9x32xf32, #tpu.memory_space<vmem>>, vector<1x9x32xf32>
    %183 = vector.shape_cast %182 : vector<1x9x32xf32> to vector<9x32xf32>
    %184 = arith.truncf %181 : vector<8x32xf32> to vector<8x32xbf16>
    %c1_77 = arith.constant 1 : index
    %c0_78 = arith.constant 0 : index
    %c0_79 = arith.constant 0 : index
    %c0_80 = arith.constant 0 : index
    %185 = vector.load %arg4[%c1_77, %c0_78, %c0_79, %c0_80] : memref<2x4x32x32xbf16, #tpu.memory_space<vmem>>, vector<1x1x32x32xbf16>
    %186 = vector.shape_cast %185 : vector<1x1x32x32xbf16> to vector<32x32xbf16>
    %cst_81 = arith.constant dense<0.000000e+00> : vector<8x32xf32>
    %187 = tpu.matmul %184, %186, %cst_81 {dimension_numbers = #tpu.dot_dimension_numbers<[1], [0], [0], [1], [0, 0, 1, 1], [], []>} : vector<8x32xbf16>, vector<32x32xbf16>, vector<8x32xf32> -> vector<8x32xf32>
    %188 = vector.extract_strided_slice %183 {offsets = [0, 0], sizes = [1, 32], strides = [1, 1]} : vector<9x32xf32> to vector<1x32xf32>
    %189 = vector.broadcast %188 : vector<1x32xf32> to vector<8x32xf32>
    %190 = arith.addf %187, %189 : vector<8x32xf32>
    %c1_82 = arith.constant 1 : index
    %c1_83 = arith.constant 1 : index
    %c0_84 = arith.constant 0 : index
    %c0_85 = arith.constant 0 : index
    %191 = vector.load %arg4[%c1_82, %c1_83, %c0_84, %c0_85] : memref<2x4x32x32xbf16, #tpu.memory_space<vmem>>, vector<1x1x32x32xbf16>
    %192 = vector.shape_cast %191 : vector<1x1x32x32xbf16> to vector<32x32xbf16>
    %cst_86 = arith.constant dense<0.000000e+00> : vector<8x32xf32>
    %193 = tpu.matmul %184, %192, %cst_86 {dimension_numbers = #tpu.dot_dimension_numbers<[1], [0], [0], [1], [0, 0, 1, 1], [], []>} : vector<8x32xbf16>, vector<32x32xbf16>, vector<8x32xf32> -> vector<8x32xf32>
    %194 = vector.extract_strided_slice %183 {offsets = [1, 0], sizes = [1, 32], strides = [1, 1]} : vector<9x32xf32> to vector<1x32xf32>
    %195 = vector.broadcast %194 : vector<1x32xf32> to vector<8x32xf32>
    %196 = arith.addf %193, %195 : vector<8x32xf32>
    %c1_87 = arith.constant 1 : index
    %c2_88 = arith.constant 2 : index
    %c0_89 = arith.constant 0 : index
    %c0_90 = arith.constant 0 : index
    %197 = vector.load %arg4[%c1_87, %c2_88, %c0_89, %c0_90] : memref<2x4x32x32xbf16, #tpu.memory_space<vmem>>, vector<1x1x32x32xbf16>
    %198 = vector.shape_cast %197 : vector<1x1x32x32xbf16> to vector<32x32xbf16>
    %cst_91 = arith.constant dense<0.000000e+00> : vector<8x32xf32>
    %199 = tpu.matmul %184, %198, %cst_91 {dimension_numbers = #tpu.dot_dimension_numbers<[1], [0], [0], [1], [0, 0, 1, 1], [], []>} : vector<8x32xbf16>, vector<32x32xbf16>, vector<8x32xf32> -> vector<8x32xf32>
    %200 = vector.extract_strided_slice %183 {offsets = [2, 0], sizes = [1, 32], strides = [1, 1]} : vector<9x32xf32> to vector<1x32xf32>
    %201 = vector.broadcast %200 : vector<1x32xf32> to vector<8x32xf32>
    %202 = arith.addf %199, %201 : vector<8x32xf32>
    %203 = arith.truncf %190 : vector<8x32xf32> to vector<8x32xbf16>
    %204 = arith.truncf %196 : vector<8x32xf32> to vector<8x32xbf16>
    %205 = arith.truncf %202 : vector<8x32xf32> to vector<8x32xbf16>
    %206 = vector.extract_strided_slice %203 {offsets = [0, 0], sizes = [8, 8], strides = [1, 1]} : vector<8x32xbf16> to vector<8x8xbf16>
    %207 = vector.extract_strided_slice %204 {offsets = [0, 0], sizes = [8, 8], strides = [1, 1]} : vector<8x32xbf16> to vector<8x8xbf16>
    %cst_92 = arith.constant dense<0.000000e+00> : vector<8x8xf32>
    %208 = tpu.matmul %206, %207, %cst_92 {dimension_numbers = #tpu.dot_dimension_numbers<[1], [1], [0], [0], [0, 0, 1, 0], [], []>} : vector<8x8xbf16>, vector<8x8xbf16>, vector<8x8xf32> -> vector<8x8xf32>
    %cst_93 = arith.constant 0.353553385 : f32
    %209 = vector.broadcast %cst_93 : f32 to vector<8x8xf32>
    %210 = arith.mulf %208, %209 : vector<8x8xf32>
    %cst_94 = arith.constant dense<0xFF800000> : vector<8xf32>
    %211 = vector.multi_reduction <maximumf>, %210, %cst_94 [1] : vector<8x8xf32> to vector<8xf32>
    %212 = vector.shape_cast %211 : vector<8xf32> to vector<8x1xf32>
    %213 = vector.broadcast %212 : vector<8x1xf32> to vector<8x8xf32>
    %214 = arith.subf %210, %213 : vector<8x8xf32>
    %215 = math.exp %214 : vector<8x8xf32>
    %cst_95 = arith.constant dense<0.000000e+00> : vector<8xf32>
    %216 = vector.multi_reduction <add>, %215, %cst_95 [1] : vector<8x8xf32> to vector<8xf32>
    %217 = vector.shape_cast %216 : vector<8xf32> to vector<8x1xf32>
    %218 = tpu.reciprocal %217 {approx = true} : vector<8x1xf32> -> vector<8x1xf32>
    %219 = vector.broadcast %218 : vector<8x1xf32> to vector<8x8xf32>
    %220 = arith.mulf %215, %219 : vector<8x8xf32>
    %221 = arith.truncf %220 : vector<8x8xf32> to vector<8x8xbf16>
    %222 = vector.extract_strided_slice %205 {offsets = [0, 0], sizes = [8, 8], strides = [1, 1]} : vector<8x32xbf16> to vector<8x8xbf16>
    %cst_96 = arith.constant dense<0.000000e+00> : vector<8x8xf32>
    %223 = tpu.matmul %221, %222, %cst_96 {dimension_numbers = #tpu.dot_dimension_numbers<[1], [0], [0], [1], [0, 0, 1, 1], [], []>} : vector<8x8xbf16>, vector<8x8xbf16>, vector<8x8xf32> -> vector<8x8xf32>
    %c0_97 = arith.constant 0 : index
    %c0_98 = arith.constant 0 : index
    %224 = vector.load %arg12[%c0_97, %c0_98] : memref<8x32xf32, #tpu.memory_space<vmem>>, vector<8x8xf32>
    tpu.vector_store %arg12[%c0_97, %c0_98], %223 {strides = array<i32>} : memref<8x32xf32, #tpu.memory_space<vmem>>, vector<8x8xf32>,
    %225 = vector.extract_strided_slice %203 {offsets = [0, 8], sizes = [8, 8], strides = [1, 1]} : vector<8x32xbf16> to vector<8x8xbf16>
    %226 = vector.extract_strided_slice %204 {offsets = [0, 8], sizes = [8, 8], strides = [1, 1]} : vector<8x32xbf16> to vector<8x8xbf16>
    %cst_99 = arith.constant dense<0.000000e+00> : vector<8x8xf32>
    %227 = tpu.matmul %225, %226, %cst_99 {dimension_numbers = #tpu.dot_dimension_numbers<[1], [1], [0], [0], [0, 0, 1, 0], [], []>} : vector<8x8xbf16>, vector<8x8xbf16>, vector<8x8xf32> -> vector<8x8xf32>
    %cst_100 = arith.constant 0.353553385 : f32
    %228 = vector.broadcast %cst_100 : f32 to vector<8x8xf32>
    %229 = arith.mulf %227, %228 : vector<8x8xf32>
    %cst_101 = arith.constant dense<0xFF800000> : vector<8xf32>
    %230 = vector.multi_reduction <maximumf>, %229, %cst_101 [1] : vector<8x8xf32> to vector<8xf32>
    %231 = vector.shape_cast %230 : vector<8xf32> to vector<8x1xf32>
    %232 = vector.broadcast %231 : vector<8x1xf32> to vector<8x8xf32>
    %233 = arith.subf %229, %232 : vector<8x8xf32>
    %234 = math.exp %233 : vector<8x8xf32>
    %cst_102 = arith.constant dense<0.000000e+00> : vector<8xf32>
    %235 = vector.multi_reduction <add>, %234, %cst_102 [1] : vector<8x8xf32> to vector<8xf32>
    %236 = vector.shape_cast %235 : vector<8xf32> to vector<8x1xf32>
    %237 = tpu.reciprocal %236 {approx = true} : vector<8x1xf32> -> vector<8x1xf32>
    %238 = vector.broadcast %237 : vector<8x1xf32> to vector<8x8xf32>
    %239 = arith.mulf %234, %238 : vector<8x8xf32>
    %240 = arith.truncf %239 : vector<8x8xf32> to vector<8x8xbf16>
    %241 = vector.extract_strided_slice %205 {offsets = [0, 8], sizes = [8, 8], strides = [1, 1]} : vector<8x32xbf16> to vector<8x8xbf16>
    %cst_103 = arith.constant dense<0.000000e+00> : vector<8x8xf32>
    %242 = tpu.matmul %240, %241, %cst_103 {dimension_numbers = #tpu.dot_dimension_numbers<[1], [0], [0], [1], [0, 0, 1, 1], [], []>} : vector<8x8xbf16>, vector<8x8xbf16>, vector<8x8xf32> -> vector<8x8xf32>
    %c0_104 = arith.constant 0 : index
    %c8_105 = arith.constant 8 : index
    %243 = vector.load %arg12[%c0_104, %c8_105] : memref<8x32xf32, #tpu.memory_space<vmem>>, vector<8x8xf32>
    tpu.vector_store %arg12[%c0_104, %c8_105], %242 {strides = array<i32>} : memref<8x32xf32, #tpu.memory_space<vmem>>, vector<8x8xf32>,
    %244 = vector.extract_strided_slice %203 {offsets = [0, 16], sizes = [8, 8], strides = [1, 1]} : vector<8x32xbf16> to vector<8x8xbf16>
    %245 = vector.extract_strided_slice %204 {offsets = [0, 16], sizes = [8, 8], strides = [1, 1]} : vector<8x32xbf16> to vector<8x8xbf16>
    %cst_106 = arith.constant dense<0.000000e+00> : vector<8x8xf32>
    %246 = tpu.matmul %244, %245, %cst_106 {dimension_numbers = #tpu.dot_dimension_numbers<[1], [1], [0], [0], [0, 0, 1, 0], [], []>} : vector<8x8xbf16>, vector<8x8xbf16>, vector<8x8xf32> -> vector<8x8xf32>
    %cst_107 = arith.constant 0.353553385 : f32
    %247 = vector.broadcast %cst_107 : f32 to vector<8x8xf32>
    %248 = arith.mulf %246, %247 : vector<8x8xf32>
    %cst_108 = arith.constant dense<0xFF800000> : vector<8xf32>
    %249 = vector.multi_reduction <maximumf>, %248, %cst_108 [1] : vector<8x8xf32> to vector<8xf32>
    %250 = vector.shape_cast %249 : vector<8xf32> to vector<8x1xf32>
    %251 = vector.broadcast %250 : vector<8x1xf32> to vector<8x8xf32>
    %252 = arith.subf %248, %251 : vector<8x8xf32>
    %253 = math.exp %252 : vector<8x8xf32>
    %cst_109 = arith.constant dense<0.000000e+00> : vector<8xf32>
    %254 = vector.multi_reduction <add>, %253, %cst_109 [1] : vector<8x8xf32> to vector<8xf32>
    %255 = vector.shape_cast %254 : vector<8xf32> to vector<8x1xf32>
    %256 = tpu.reciprocal %255 {approx = true} : vector<8x1xf32> -> vector<8x1xf32>
    %257 = vector.broadcast %256 : vector<8x1xf32> to vector<8x8xf32>
    %258 = arith.mulf %253, %257 : vector<8x8xf32>
    %259 = arith.truncf %258 : vector<8x8xf32> to vector<8x8xbf16>
    %260 = vector.extract_strided_slice %205 {offsets = [0, 16], sizes = [8, 8], strides = [1, 1]} : vector<8x32xbf16> to vector<8x8xbf16>
    %cst_110 = arith.constant dense<0.000000e+00> : vector<8x8xf32>
    %261 = tpu.matmul %259, %260, %cst_110 {dimension_numbers = #tpu.dot_dimension_numbers<[1], [0], [0], [1], [0, 0, 1, 1], [], []>} : vector<8x8xbf16>, vector<8x8xbf16>, vector<8x8xf32> -> vector<8x8xf32>
    %c0_111 = arith.constant 0 : index
    %c16_112 = arith.constant 16 : index
    %262 = vector.load %arg12[%c0_111, %c16_112] : memref<8x32xf32, #tpu.memory_space<vmem>>, vector<8x8xf32>
    tpu.vector_store %arg12[%c0_111, %c16_112], %261 {strides = array<i32>} : memref<8x32xf32, #tpu.memory_space<vmem>>, vector<8x8xf32>,
    %263 = vector.extract_strided_slice %203 {offsets = [0, 24], sizes = [8, 8], strides = [1, 1]} : vector<8x32xbf16> to vector<8x8xbf16>
    %264 = vector.extract_strided_slice %204 {offsets = [0, 24], sizes = [8, 8], strides = [1, 1]} : vector<8x32xbf16> to vector<8x8xbf16>
    %cst_113 = arith.constant dense<0.000000e+00> : vector<8x8xf32>
    %265 = tpu.matmul %263, %264, %cst_113 {dimension_numbers = #tpu.dot_dimension_numbers<[1], [1], [0], [0], [0, 0, 1, 0], [], []>} : vector<8x8xbf16>, vector<8x8xbf16>, vector<8x8xf32> -> vector<8x8xf32>
    %cst_114 = arith.constant 0.353553385 : f32
    %266 = vector.broadcast %cst_114 : f32 to vector<8x8xf32>
    %267 = arith.mulf %265, %266 : vector<8x8xf32>
    %cst_115 = arith.constant dense<0xFF800000> : vector<8xf32>
    %268 = vector.multi_reduction <maximumf>, %267, %cst_115 [1] : vector<8x8xf32> to vector<8xf32>
    %269 = vector.shape_cast %268 : vector<8xf32> to vector<8x1xf32>
    %270 = vector.broadcast %269 : vector<8x1xf32> to vector<8x8xf32>
    %271 = arith.subf %267, %270 : vector<8x8xf32>
    %272 = math.exp %271 : vector<8x8xf32>
    %cst_116 = arith.constant dense<0.000000e+00> : vector<8xf32>
    %273 = vector.multi_reduction <add>, %272, %cst_116 [1] : vector<8x8xf32> to vector<8xf32>
    %274 = vector.shape_cast %273 : vector<8xf32> to vector<8x1xf32>
    %275 = tpu.reciprocal %274 {approx = true} : vector<8x1xf32> -> vector<8x1xf32>
    %276 = vector.broadcast %275 : vector<8x1xf32> to vector<8x8xf32>
    %277 = arith.mulf %272, %276 : vector<8x8xf32>
    %278 = arith.truncf %277 : vector<8x8xf32> to vector<8x8xbf16>
    %279 = vector.extract_strided_slice %205 {offsets = [0, 24], sizes = [8, 8], strides = [1, 1]} : vector<8x32xbf16> to vector<8x8xbf16>
    %cst_117 = arith.constant dense<0.000000e+00> : vector<8x8xf32>
    %280 = tpu.matmul %278, %279, %cst_117 {dimension_numbers = #tpu.dot_dimension_numbers<[1], [0], [0], [1], [0, 0, 1, 1], [], []>} : vector<8x8xbf16>, vector<8x8xbf16>, vector<8x8xf32> -> vector<8x8xf32>
    %c0_118 = arith.constant 0 : index
    %c24_119 = arith.constant 24 : index
    %281 = vector.load %arg12[%c0_118, %c24_119] : memref<8x32xf32, #tpu.memory_space<vmem>>, vector<8x8xf32>
    tpu.vector_store %arg12[%c0_118, %c24_119], %280 {strides = array<i32>} : memref<8x32xf32, #tpu.memory_space<vmem>>, vector<8x8xf32>,
    %c0_120 = arith.constant 0 : index
    %c0_121 = arith.constant 0 : index
    %282 = vector.load %arg12[%c0_120, %c0_121] : memref<8x32xf32, #tpu.memory_space<vmem>>, vector<8x32xf32>
    %283 = arith.truncf %282 : vector<8x32xf32> to vector<8x32xbf16>
    %c1_122 = arith.constant 1 : index
    %c3_123 = arith.constant 3 : index
    %c0_124 = arith.constant 0 : index
    %c0_125 = arith.constant 0 : index
    %284 = vector.load %arg4[%c1_122, %c3_123, %c0_124, %c0_125] : memref<2x4x32x32xbf16, #tpu.memory_space<vmem>>, vector<1x1x32x32xbf16>
    %285 = vector.shape_cast %284 : vector<1x1x32x32xbf16> to vector<32x32xbf16>
    %cst_126 = arith.constant dense<0.000000e+00> : vector<8x32xf32>
    %286 = tpu.matmul %283, %285, %cst_126 {dimension_numbers = #tpu.dot_dimension_numbers<[1], [0], [0], [1], [0, 0, 1, 1], [], []>} : vector<8x32xbf16>, vector<32x32xbf16>, vector<8x32xf32> -> vector<8x32xf32>
    %287 = vector.extract_strided_slice %183 {offsets = [3, 0], sizes = [1, 32], strides = [1, 1]} : vector<9x32xf32> to vector<1x32xf32>
    %288 = vector.broadcast %287 : vector<1x32xf32> to vector<8x32xf32>
    %289 = arith.addf %286, %288 : vector<8x32xf32>
    %290 = arith.addf %181, %289 : vector<8x32xf32>
    %291 = vector.extract_strided_slice %183 {offsets = [4, 0], sizes = [1, 32], strides = [1, 1]} : vector<9x32xf32> to vector<1x32xf32>
    %292 = vector.extract_strided_slice %183 {offsets = [5, 0], sizes = [1, 32], strides = [1, 1]} : vector<9x32xf32> to vector<1x32xf32>
    %cst_127 = arith.constant dense<0.000000e+00> : vector<8xf32>
    %293 = vector.multi_reduction <add>, %290, %cst_127 [1] : vector<8x32xf32> to vector<8xf32>
    %294 = vector.shape_cast %293 : vector<8xf32> to vector<8x1xf32>
    %cst_128 = arith.constant 3.200000e+01 : f32
    %295 = vector.broadcast %cst_128 : f32 to vector<8x1xf32>
    %296 = arith.divf %294, %295 : vector<8x1xf32>
    %297 = vector.broadcast %296 : vector<8x1xf32> to vector<8x32xf32>
    %298 = arith.subf %290, %297 : vector<8x32xf32>
    %299 = arith.mulf %298, %298 : vector<8x32xf32>
    %cst_129 = arith.constant dense<0.000000e+00> : vector<8xf32>
    %300 = vector.multi_reduction <add>, %299, %cst_129 [1] : vector<8x32xf32> to vector<8xf32>
    %301 = vector.shape_cast %300 : vector<8xf32> to vector<8x1xf32>
    %cst_130 = arith.constant 3.200000e+01 : f32
    %302 = vector.broadcast %cst_130 : f32 to vector<8x1xf32>
    %303 = arith.divf %301, %302 : vector<8x1xf32>
    %cst_131 = arith.constant 9.99999974E-6 : f32
    %304 = vector.broadcast %cst_131 : f32 to vector<8x1xf32>
    %305 = arith.addf %303, %304 : vector<8x1xf32>
    %306 = math.rsqrt %305 : vector<8x1xf32>
    %307 = vector.broadcast %306 : vector<8x1xf32> to vector<8x32xf32>
    %308 = arith.mulf %298, %307 : vector<8x32xf32>
    %309 = vector.broadcast %291 : vector<1x32xf32> to vector<8x32xf32>
    %310 = arith.mulf %308, %309 : vector<8x32xf32>
    %311 = vector.broadcast %292 : vector<1x32xf32> to vector<8x32xf32>
    %312 = arith.addf %310, %311 : vector<8x32xf32>
    %313 = arith.truncf %312 : vector<8x32xf32> to vector<8x32xbf16>
    %c1_132 = arith.constant 1 : index
    %c0_133 = arith.constant 0 : index
    %c0_134 = arith.constant 0 : index
    %314 = vector.load %arg5[%c1_132, %c0_133, %c0_134] : memref<2x32x64xbf16, #tpu.memory_space<vmem>>, vector<1x32x64xbf16>
    %315 = vector.shape_cast %314 : vector<1x32x64xbf16> to vector<32x64xbf16>
    %cst_135 = arith.constant dense<0.000000e+00> : vector<8x64xf32>
    %316 = tpu.matmul %313, %315, %cst_135 {dimension_numbers = #tpu.dot_dimension_numbers<[1], [0], [0], [1], [0, 0, 1, 1], [], []>} : vector<8x32xbf16>, vector<32x64xbf16>, vector<8x64xf32> -> vector<8x64xf32>
    %c1_136 = arith.constant 1 : index
    %c0_137 = arith.constant 0 : index
    %c0_138 = arith.constant 0 : index
    %317 = vector.load %arg8[%c1_136, %c0_137, %c0_138] : memref<2x1x64xf32, #tpu.memory_space<vmem>>, vector<1x1x64xf32>
    %318 = vector.shape_cast %317 : vector<1x1x64xf32> to vector<1x64xf32>
    %319 = vector.broadcast %318 : vector<1x64xf32> to vector<8x64xf32>
    %320 = arith.addf %316, %319 : vector<8x64xf32>
    %cst_139 = arith.constant 0.000000e+00 : f32
    %321 = vector.broadcast %cst_139 : f32 to vector<8x64xf32>
    %322 = arith.maximumf %320, %321 : vector<8x64xf32>
    %323 = arith.truncf %322 : vector<8x64xf32> to vector<8x64xbf16>
    %c1_140 = arith.constant 1 : index
    %c0_141 = arith.constant 0 : index
    %c0_142 = arith.constant 0 : index
    %324 = vector.load %arg6[%c1_140, %c0_141, %c0_142] : memref<2x64x32xbf16, #tpu.memory_space<vmem>>, vector<1x64x32xbf16>
    %325 = vector.shape_cast %324 : vector<1x64x32xbf16> to vector<64x32xbf16>
    %cst_143 = arith.constant dense<0.000000e+00> : vector<8x32xf32>
    %326 = tpu.matmul %323, %325, %cst_143 {dimension_numbers = #tpu.dot_dimension_numbers<[1], [0], [0], [1], [0, 0, 1, 1], [], []>} : vector<8x64xbf16>, vector<64x32xbf16>, vector<8x32xf32> -> vector<8x32xf32>
    %327 = vector.extract_strided_slice %183 {offsets = [6, 0], sizes = [1, 32], strides = [1, 1]} : vector<9x32xf32> to vector<1x32xf32>
    %328 = vector.broadcast %327 : vector<1x32xf32> to vector<8x32xf32>
    %329 = arith.addf %326, %328 : vector<8x32xf32>
    %330 = arith.addf %312, %329 : vector<8x32xf32>
    %331 = vector.extract_strided_slice %183 {offsets = [7, 0], sizes = [1, 32], strides = [1, 1]} : vector<9x32xf32> to vector<1x32xf32>
    %332 = vector.extract_strided_slice %183 {offsets = [8, 0], sizes = [1, 32], strides = [1, 1]} : vector<9x32xf32> to vector<1x32xf32>
    %cst_144 = arith.constant dense<0.000000e+00> : vector<8xf32>
    %333 = vector.multi_reduction <add>, %330, %cst_144 [1] : vector<8x32xf32> to vector<8xf32>
    %334 = vector.shape_cast %333 : vector<8xf32> to vector<8x1xf32>
    %cst_145 = arith.constant 3.200000e+01 : f32
    %335 = vector.broadcast %cst_145 : f32 to vector<8x1xf32>
    %336 = arith.divf %334, %335 : vector<8x1xf32>
    %337 = vector.broadcast %336 : vector<8x1xf32> to vector<8x32xf32>
    %338 = arith.subf %330, %337 : vector<8x32xf32>
    %339 = arith.mulf %338, %338 : vector<8x32xf32>
    %cst_146 = arith.constant dense<0.000000e+00> : vector<8xf32>
    %340 = vector.multi_reduction <add>, %339, %cst_146 [1] : vector<8x32xf32> to vector<8xf32>
    %341 = vector.shape_cast %340 : vector<8xf32> to vector<8x1xf32>
    %cst_147 = arith.constant 3.200000e+01 : f32
    %342 = vector.broadcast %cst_147 : f32 to vector<8x1xf32>
    %343 = arith.divf %341, %342 : vector<8x1xf32>
    %cst_148 = arith.constant 9.99999974E-6 : f32
    %344 = vector.broadcast %cst_148 : f32 to vector<8x1xf32>
    %345 = arith.addf %343, %344 : vector<8x1xf32>
    %346 = math.rsqrt %345 : vector<8x1xf32>
    %347 = vector.broadcast %346 : vector<8x1xf32> to vector<8x32xf32>
    %348 = arith.mulf %338, %347 : vector<8x32xf32>
    %349 = vector.broadcast %331 : vector<1x32xf32> to vector<8x32xf32>
    %350 = arith.mulf %348, %349 : vector<8x32xf32>
    %351 = vector.broadcast %332 : vector<1x32xf32> to vector<8x32xf32>
    %352 = arith.addf %350, %351 : vector<8x32xf32>
    %353 = arith.truncf %352 : vector<8x32xf32> to vector<8x32xbf16>
    %c0_149 = arith.constant 0 : index
    %c0_150 = arith.constant 0 : index
    %354 = vector.load %arg9[%c0_149, %c0_150] : memref<32x128xbf16, #tpu.memory_space<vmem>>, vector<32x128xbf16>
    %cst_151 = arith.constant dense<0.000000e+00> : vector<8x128xf32>
    %355 = tpu.matmul %353, %354, %cst_151 {dimension_numbers = #tpu.dot_dimension_numbers<[1], [0], [0], [1], [0, 0, 1, 1], [], []>} : vector<8x32xbf16>, vector<32x128xbf16>, vector<8x128xf32> -> vector<8x128xf32>
    %c0_152 = arith.constant 0 : index
    %c0_153 = arith.constant 0 : index
    %356 = vector.load %arg10[%c0_152, %c0_153] : memref<1x128xf32, #tpu.memory_space<vmem>>, vector<1x128xf32>
    %357 = vector.broadcast %356 : vector<1x128xf32> to vector<8x128xf32>
    %358 = arith.addf %355, %357 : vector<8x128xf32>
    %c0_154 = arith.constant 0 : index
    %c0_155 = arith.constant 0 : index
    %359 = vector.load %arg11[%c0_154, %c0_155] : memref<8x128xf32, #tpu.memory_space<vmem>>, vector<8x128xf32>
    tpu.vector_store %arg11[%c0_154, %c0_155], %358 {strides = array<i32>} : memref<8x128xf32, #tpu.memory_space<vmem>>, vector<8x128xf32>,
    return
  }
  func.func @transform_0(%arg0: i32) -> (i32, i32) {
    %c0_i32 = arith.constant 0 : i32
    %c0_i32_0 = arith.constant 0 : i32
    return %arg0, %c0_i32 : i32, i32
  }
  func.func @transform_1(%arg0: i32) -> (i32, i32) {
    %c0_i32 = arith.constant 0 : i32
    %c0_i32_0 = arith.constant 0 : i32
    %c0_i32_1 = arith.constant 0 : i32
    return %c0_i32, %c0_i32_0 : i32, i32
  }
  func.func @transform_2(%arg0: i32) -> (i32, i32) {
    %c0_i32 = arith.constant 0 : i32
    %c0_i32_0 = arith.constant 0 : i32
    %c0_i32_1 = arith.constant 0 : i32
    return %c0_i32, %c0_i32_0 : i32, i32
  }
  func.func @transform_3(%arg0: i32) -> (i32, i32, i32, i32) {
    %c0_i32 = arith.constant 0 : i32
    %c0_i32_0 = arith.constant 0 : i32
    %c0_i32_1 = arith.constant 0 : i32
    %c0_i32_2 = arith.constant 0 : i32
    %c0_i32_3 = arith.constant 0 : i32
    return %c0_i32, %c0_i32_0, %c0_i32_1, %c0_i32_2 : i32, i32, i32, i32
  }
  func.func @transform_4(%arg0: i32) -> (i32, i32, i32) {
    %c0_i32 = arith.constant 0 : i32
    %c0_i32_0 = arith.constant 0 : i32
    %c0_i32_1 = arith.constant 0 : i32
    %c0_i32_2 = arith.constant 0 : i32
    return %c0_i32, %c0_i32_0, %c0_i32_1 : i32, i32, i32
  }
  func.func @transform_5(%arg0: i32) -> (i32, i32, i32) {
    %c0_i32 = arith.constant 0 : i32
    %c0_i32_0 = arith.constant 0 : i32
    %c0_i32_1 = arith.constant 0 : i32
    %c0_i32_2 = arith.constant 0 : i32
    return %c0_i32, %c0_i32_0, %c0_i32_1 : i32, i32, i32
  }
  func.func @transform_6(%arg0: i32) -> (i32, i32, i32) {
    %c0_i32 = arith.constant 0 : i32
    %c0_i32_0 = arith.constant 0 : i32
    %c0_i32_1 = arith.constant 0 : i32
    %c0_i32_2 = arith.constant 0 : i32
    return %c0_i32, %c0_i32_0, %c0_i32_1 : i32, i32, i32
  }
  func.func @transform_7(%arg0: i32) -> (i32, i32, i32) {
    %c0_i32 = arith.constant 0 : i32
    %c0_i32_0 = arith.constant 0 : i32
    %c0_i32_1 = arith.constant 0 : i32
    %c0_i32_2 = arith.constant 0 : i32
    return %c0_i32, %c0_i32_0, %c0_i32_1 : i32, i32, i32
  }
  func.func @transform_8(%arg0: i32) -> (i32, i32) {
    %c0_i32 = arith.constant 0 : i32
    %c0_i32_0 = arith.constant 0 : i32
    %c0_i32_1 = arith.constant 0 : i32
    return %c0_i32, %c0_i32_0 : i32, i32
  }
  func.func @transform_9(%arg0: i32) -> (i32, i32) {
    %c0_i32 = arith.constant 0 : i32
    %c0_i32_0 = arith.constant 0 : i32
    %c0_i32_1 = arith.constant 0 : i32
    return %c0_i32, %c0_i32_0 : i32, i32
  }
  func.func @transform_10(%arg0: i32) -> (i32, i32) {
    %c0_i32 = arith.constant 0 : i32
    %c0_i32_0 = arith.constant 0 : i32
    return %arg0, %c0_i32 : i32, i32
  }
}

</mosaic_0001>

<llo_original>
// kernel: model_forward.1
$region0: #{model_forward.1}
  #allocation0 [shape = 'u32[]', space=smem, size = 0x4, offset = 0x4, fixed_abs, tag = 'smem constant byte address 0x4 - core index']
  #allocation1 [shape = 'u32[72,128]{1,0:T(1,128)}', space=vmem, size = 0x9000, scoped, tag = 'internal scratch']
  #allocation2 [shape = 'f32[8,32]{1,0:T(8,128)}', space=vmem, size = 0x1000, scoped, tag = 'scratch operand']
  %s0 = inlined_call_operand.vmem [shape: s32[16,1], index: 0, kind: input, shape index: {}]
  %s1 = inlined_call_operand.vmem [shape: bf16[32,32], index: 1, kind: input, shape index: {}]
  %s2 = inlined_call_operand.vmem [shape: f32[16,32], index: 2, kind: input, shape index: {}]
  %s3 = inlined_call_operand.hbm [shape: bf16[2,4,32,32], index: 3, kind: input, shape index: {}]
  %s4 = inlined_call_operand.vmem [shape: bf16[2,32,64], index: 4, kind: input, shape index: {}]
  %s5 = inlined_call_operand.vmem [shape: bf16[2,64,32], index: 5, kind: input, shape index: {}]
  %s6 = inlined_call_operand.vmem [shape: f32[2,9,32], index: 6, kind: input, shape index: {}]
  %s7 = inlined_call_operand.vmem [shape: f32[2,1,64], index: 7, kind: input, shape index: {}]
  %s8 = inlined_call_operand.vmem [shape: bf16[32,128], index: 8, kind: input, shape index: {}]
  %s9 = inlined_call_operand.vmem [shape: f32[1,128], index: 9, kind: input, shape index: {}]
  %s10 = inlined_call_operand.vmem [shape: f32[16,128], index: 10, kind: output, shape index: {}]
  %s11 = sld [smem:[#allocation0]]
  $region77: #{model_forward.1} parent=0
    _
  %s13 = ssub.s32 1, %s11
  %s14 = scalar_select 0, %s13, %s11
  $region1: #{model_forward.1} parent=0
    #allocation3 [shape = 'u8[65536]{0}', space=vmem, size = 0x10000, scoped, tag = 'input window, operand 3, single buffered']
    #allocation4 [shape = 's32[2]{0}', space=sflag, size = 0x8, scoped, tag = 'scoped memory for model_forward.1']
    %15 = vsyncpa [#allocation4], 0
    loop: start=0, step=1, limit=4
    $region2: #{model_forward.1} parent=1 // loop_pre_header
      _
    $region3: #{model_forward.1} parent=1 // loop_header
      %s17 = sphi 0, %s21
      %p18 = scmp.ge.s32.totalorder %s17, 4
      %s27 = sphi 0, %s29
      %s30 = sphi 0, %s27
      %s31 = sphi 0, %s30
      %s47 = sphi 0, %s31
      %s51 = sphi 0, %s51
      %s53 = sphi 0, %s51
      %s54 = sphi 0, %s53
      %s68 = sphi 0, %s54
      %s72 = sphi 0, %s72
      %s74 = sphi 0, %s72
      %s75 = sphi 0, %s74
      %s89 = sphi 0, %s75
      %s93 = sphi 0, %s93
      %s95 = sphi 0, %s93
      %s96 = sphi 0, %s95
      %s110 = sphi 0, %s96
      %s114 = sphi 0, %s114
      %s116 = sphi 0, %s114
      %s117 = sphi 0, %s116
      %s131 = sphi 0, %s117
      %s135 = sphi 0, %s135
      %s137 = sphi 0, %s135
      %s138 = sphi 0, %s137
      %s152 = sphi 0, %s138
      %s156 = sphi 0, %s156
      %s158 = sphi 0, %s156
      %s159 = sphi 0, %s158
      %s173 = sphi 0, %s159
      %s177 = sphi 0, %s177
      %s179 = sphi 0, %s177
      %s180 = sphi 0, %s179
      %s194 = sphi 0, %s180
      %s198 = sphi 0, %s198
      %s200 = sphi 0, %s198
      %s201 = sphi 0, %s200
      %s215 = sphi 0, %s201
      %s219 = sphi 0, %s219
      %s221 = sphi 0, %s219
      %s222 = sphi 0, %s221
      %s236 = sphi 0, %s222
      %s242 = sphi 0, %s244
      %s245 = sphi 0, %s242
      %s246 = sphi 0, %s245
      %s262 = sphi 0, %s246
    $region4: #{model_forward.1} parent=1 // loop_header_branch
      %20 = sbr.rel (%p18) target = $region8
    $region5: #{model_forward.1} parent=1 // loop_body
      %s22 = ssub.s32 %s17, 1
      %s23 = ssub.s32 %s17, 2
      %s24 = sadd.s32 %s17, 1
      %s25 = ssub.s32 %s17, %s24
      %p26 = scmp.eq.s32.totalorder %s25, 0
      %s28 = sadd.s32 %s27, 1
      %s29 = scalar_select %p26, %s27, %s28
      %p32 = pneg %p26
      %p33 = scmp.eq.s32.totalorder %s17, 1
      %p34 = por %p32, %p33
      %p35 = scmp.ne.s32.totalorder %s27, %s30
      %p36 = scmp.eq.s32.totalorder %s17, 0
      %p37 = por %p35, %p36
      %p38 = scmp.ne.s32.totalorder %s27, %s30
      %p39 = scmp.eq.s32.totalorder %s22, 1
      %p40 = por %p38, %p39
      %p41 = scmp.ne.s32.totalorder %s30, %s31
      %p42 = scmp.eq.s32.totalorder %s22, 0
      %p43 = por %p41, %p42
      %p44 = scmp.ne.s32.totalorder %s30, %s31
      %p45 = scmp.eq.s32.totalorder %s23, 1
      %p46 = por %p44, %p45
      %p48 = scmp.ne.s32.totalorder %s31, %s47
      %p49 = scmp.eq.s32.totalorder %s23, 0
      %p50 = por %p48, %p49
      %s52 = sadd.s32 %s51, 1
      %p55 = scmp.eq.s32.totalorder %s17, 1
      %p56 = scmp.ne.s32.totalorder %s51, %s53
      %p57 = scmp.eq.s32.totalorder %s17, 0
      %p58 = por %p56, %p57
      %p59 = scmp.ne.s32.totalorder %s51, %s53
      %p60 = scmp.eq.s32.totalorder %s22, 1
      %p61 = por %p59, %p60
      %p62 = scmp.ne.s32.totalorder %s53, %s54
      %p63 = scmp.eq.s32.totalorder %s22, 0
      %p64 = por %p62, %p63
      %p65 = scmp.ne.s32.totalorder %s53, %s54
      %p66 = scmp.eq.s32.totalorder %s23, 1
      %p67 = por %p65, %p66
      %p69 = scmp.ne.s32.totalorder %s54, %s68
      %p70 = scmp.eq.s32.totalorder %s23, 0
      %p71 = por %p69, %p70
      %s73 = sadd.s32 %s72, 1
      %p76 = scmp.eq.s32.totalorder %s17, 1
      %p77 = scmp.ne.s32.totalorder %s72, %s74
      %p78 = scmp.eq.s32.totalorder %s17, 0
      %p79 = por %p77, %p78
      %p80 = scmp.ne.s32.totalorder %s72, %s74
      %p81 = scmp.eq.s32.totalorder %s22, 1
      %p82 = por %p80, %p81
      %p83 = scmp.ne.s32.totalorder %s74, %s75
      %p84 = scmp.eq.s32.totalorder %s22, 0
      %p85 = por %p83, %p84
      %p86 = scmp.ne.s32.totalorder %s74, %s75
      %p87 = scmp.eq.s32.totalorder %s23, 1
      %p88 = por %p86, %p87
      %p90 = scmp.ne.s32.totalorder %s75, %s89
      %p91 = scmp.eq.s32.totalorder %s23, 0
      %p92 = por %p90, %p91
      %s94 = sadd.s32 %s93, 1
      %p97 = scmp.eq.s32.totalorder %s17, 1
      %p98 = scmp.ne.s32.totalorder %s93, %s95
      %p99 = scmp.eq.s32.totalorder %s17, 0
      %p100 = por %p98, %p99
      %p101 = scmp.ne.s32.totalorder %s93, %s95
      %p102 = scmp.eq.s32.totalorder %s22, 1
      %p103 = por %p101, %p102
      %p104 = scmp.ne.s32.totalorder %s95, %s96
      %p105 = scmp.eq.s32.totalorder %s22, 0
      %p106 = por %p104, %p105
      %p107 = scmp.ne.s32.totalorder %s95, %s96
      %p108 = scmp.eq.s32.totalorder %s23, 1
      %p109 = por %p107, %p108
      %p111 = scmp.ne.s32.totalorder %s96, %s110
      %p112 = scmp.eq.s32.totalorder %s23, 0
      %p113 = por %p111, %p112
      %s115 = sadd.s32 %s114, 1
      %p118 = scmp.eq.s32.totalorder %s17, 1
      %p119 = scmp.ne.s32.totalorder %s114, %s116
      %p120 = scmp.eq.s32.totalorder %s17, 0
      %p121 = por %p119, %p120
      %p122 = scmp.ne.s32.totalorder %s114, %s116
      %p123 = scmp.eq.s32.totalorder %s22, 1
      %p124 = por %p122, %p123
      %p125 = scmp.ne.s32.totalorder %s116, %s117
      %p126 = scmp.eq.s32.totalorder %s22, 0
      %p127 = por %p125, %p126
      %p128 = scmp.ne.s32.totalorder %s116, %s117
      %p129 = scmp.eq.s32.totalorder %s23, 1
      %p130 = por %p128, %p129
      %p132 = scmp.ne.s32.totalorder %s117, %s131
      %p133 = scmp.eq.s32.totalorder %s23, 0
      %p134 = por %p132, %p133
      %s136 = sadd.s32 %s135, 1
      %p139 = scmp.eq.s32.totalorder %s17, 1
      %p140 = scmp.ne.s32.totalorder %s135, %s137
      %p141 = scmp.eq.s32.totalorder %s17, 0
      %p142 = por %p140, %p141
      %p143 = scmp.ne.s32.totalorder %s135, %s137
      %p144 = scmp.eq.s32.totalorder %s22, 1
      %p145 = por %p143, %p144
      %p146 = scmp.ne.s32.totalorder %s137, %s138
      %p147 = scmp.eq.s32.totalorder %s22, 0
      %p148 = por %p146, %p147
      %p149 = scmp.ne.s32.totalorder %s137, %s138
      %p150 = scmp.eq.s32.totalorder %s23, 1
      %p151 = por %p149, %p150
      %p153 = scmp.ne.s32.totalorder %s138, %s152
      %p154 = scmp.eq.s32.totalorder %s23, 0
      %p155 = por %p153, %p154
      %s157 = sadd.s32 %s156, 1
      %p160 = scmp.eq.s32.totalorder %s17, 1
      %p161 = scmp.ne.s32.totalorder %s156, %s158
      %p162 = scmp.eq.s32.totalorder %s17, 0
      %p163 = por %p161, %p162
      %p164 = scmp.ne.s32.totalorder %s156, %s158
      %p165 = scmp.eq.s32.totalorder %s22, 1
      %p166 = por %p164, %p165
      %p167 = scmp.ne.s32.totalorder %s158, %s159
      %p168 = scmp.eq.s32.totalorder %s22, 0
      %p169 = por %p167, %p168
      %p170 = scmp.ne.s32.totalorder %s158, %s159
      %p171 = scmp.eq.s32.totalorder %s23, 1
      %p172 = por %p170, %p171
      %p174 = scmp.ne.s32.totalorder %s159, %s173
      %p175 = scmp.eq.s32.totalorder %s23, 0
      %p176 = por %p174, %p175
      %s178 = sadd.s32 %s177, 1
      %p181 = scmp.eq.s32.totalorder %s17, 1
      %p182 = scmp.ne.s32.totalorder %s177, %s179
      %p183 = scmp.eq.s32.totalorder %s17, 0
      %p184 = por %p182, %p183
      %p185 = scmp.ne.s32.totalorder %s177, %s179
      %p186 = scmp.eq.s32.totalorder %s22, 1
      %p187 = por %p185, %p186
      %p188 = scmp.ne.s32.totalorder %s179, %s180
      %p189 = scmp.eq.s32.totalorder %s22, 0
      %p190 = por %p188, %p189
      %p191 = scmp.ne.s32.totalorder %s179, %s180
      %p192 = scmp.eq.s32.totalorder %s23, 1
      %p193 = por %p191, %p192
      %p195 = scmp.ne.s32.totalorder %s180, %s194
      %p196 = scmp.eq.s32.totalorder %s23, 0
      %p197 = por %p195, %p196
      %s199 = sadd.s32 %s198, 1
      %p202 = scmp.eq.s32.totalorder %s17, 1
      %p203 = scmp.ne.s32.totalorder %s198, %s200
      %p204 = scmp.eq.s32.totalorder %s17, 0
      %p205 = por %p203, %p204
      %p206 = scmp.ne.s32.totalorder %s198, %s200
      %p207 = scmp.eq.s32.totalorder %s22, 1
      %p208 = por %p206, %p207
      %p209 = scmp.ne.s32.totalorder %s200, %s201
      %p210 = scmp.eq.s32.totalorder %s22, 0
      %p211 = por %p209, %p210
      %p212 = scmp.ne.s32.totalorder %s200, %s201
      %p213 = scmp.eq.s32.totalorder %s23, 1
      %p214 = por %p212, %p213
      %p216 = scmp.ne.s32.totalorder %s201, %s215
      %p217 = scmp.eq.s32.totalorder %s23, 0
      %p218 = por %p216, %p217
      %s220 = sadd.s32 %s219, 1
      %p223 = scmp.eq.s32.totalorder %s17, 1
      %p224 = scmp.ne.s32.totalorder %s219, %s221
      %p225 = scmp.eq.s32.totalorder %s17, 0
      %p226 = por %p224, %p225
      %p227 = scmp.ne.s32.totalorder %s219, %s221
      %p228 = scmp.eq.s32.totalorder %s22, 1
      %p229 = por %p227, %p228
      %p230 = scmp.ne.s32.totalorder %s221, %s222
      %p231 = scmp.eq.s32.totalorder %s22, 0
      %p232 = por %p230, %p231
      %p233 = scmp.ne.s32.totalorder %s221, %s222
      %p234 = scmp.eq.s32.totalorder %s23, 1
      %p235 = por %p233, %p234
      %p237 = scmp.ne.s32.totalorder %s222, %s236
      %p238 = scmp.eq.s32.totalorder %s23, 0
      %p239 = por %p237, %p238
      %s240 = ssub.s32 %s17, %s24
      %p241 = scmp.eq.s32.totalorder %s240, 0
      %s243 = sadd.s32 %s242, 1
      %s244 = scalar_select %p241, %s242, %s243
      %p247 = pneg %p241
      %p248 = scmp.eq.s32.totalorder %s17, 1
      %p249 = por %p247, %p248
      %p250 = scmp.ne.s32.totalorder %s242, %s245
      %p251 = scmp.eq.s32.totalorder %s17, 0
      %p252 = por %p250, %p251
      %p253 = scmp.ne.s32.totalorder %s242, %s245
      %p254 = scmp.eq.s32.totalorder %s22, 1
      %p255 = por %p253, %p254
      %p256 = scmp.ne.s32.totalorder %s245, %s246
      %p257 = scmp.eq.s32.totalorder %s22, 0
      %p258 = por %p256, %p257
      %p259 = scmp.ne.s32.totalorder %s245, %s246
      %p260 = scmp.eq.s32.totalorder %s23, 1
      %p261 = por %p259, %p260
      %p263 = scmp.ne.s32.totalorder %s246, %s262
      %p264 = scmp.eq.s32.totalorder %s23, 0
      %p265 = por %p263, %p264
      %p266 = scmp.le.s32.totalorder 1, %s17
      %p267 = scmp.lt.s32.totalorder %s17, 3
      %p268 = pnand %p266, %p267
      %p269 = pneg %p268
      // Predicated region
      $region9: #{model_forward.1} parent=5 // pred_check
        _
      $region10: #{model_forward.1} parent=5 // pred_check_branch
        %271 = sbr.rel (%p268) target = $region12
      $region11: #{model_forward.1} parent=5 // pred_region
        %s272 = ssub.s32 %s17, 1
        // Predicated region
        $region13: #{model_forward.1} parent=11 // pred_check
          %p273 = pneg %p64
        $region14: #{model_forward.1} parent=11 // pred_check_branch
          %275 = sbr.rel (%p273) target = $region16
        $region15: #{model_forward.1} parent=11 // pred_region
          _
        $region16: #{model_forward.1} parent=11 // pred_fallthru
          _
        // Predicated region
        $region17: #{model_forward.1} parent=11 // pred_check
          %p276 = pneg %p85
        $region18: #{model_forward.1} parent=11 // pred_check_branch
          %278 = sbr.rel (%p276) target = $region20
        $region19: #{model_forward.1} parent=11 // pred_region
          _
        $region20: #{model_forward.1} parent=11 // pred_fallthru
          _
        // Predicated region
        $region21: #{model_forward.1} parent=11 // pred_check
          %p279 = pneg %p106
        $region22: #{model_forward.1} parent=11 // pred_check_branch
          %281 = sbr.rel (%p279) target = $region24
        $region23: #{model_forward.1} parent=11 // pred_region
          %283 = vsyncadd [#allocation4], 0
          %s284 = sshll.u32 %s3, 4
          %s285 = int_to_ptr.hbm [resolvable:$true] %s284
          %s286 = sshll.u32 [#allocation3], 4
          %s287 = int_to_ptr.vmem [resolvable:$true] %s286
          %292 = dma.hbm_to_vmem [thread:$0]  %s285, 2048, %s287, [#allocation4], 64, 64, 4
        $region24: #{model_forward.1} parent=11 // pred_fallthru
          _
        // Predicated region
        $region25: #{model_forward.1} parent=11 // pred_check
          %p293 = pneg %p127
        $region26: #{model_forward.1} parent=11 // pred_check_branch
          %295 = sbr.rel (%p293) target = $region28
        $region27: #{model_forward.1} parent=11 // pred_region
          _
        $region28: #{model_forward.1} parent=11 // pred_fallthru
          _
        // Predicated region
        $region29: #{model_forward.1} parent=11 // pred_check
          %p296 = pneg %p148
        $region30: #{model_forward.1} parent=11 // pred_check_branch
          %298 = sbr.rel (%p296) target = $region32
        $region31: #{model_forward.1} parent=11 // pred_region
          _
        $region32: #{model_forward.1} parent=11 // pred_fallthru
          _
        // Predicated region
        $region33: #{model_forward.1} parent=11 // pred_check
          %p299 = pneg %p169
        $region34: #{model_forward.1} parent=11 // pred_check_branch
          %301 = sbr.rel (%p299) target = $region36
        $region35: #{model_forward.1} parent=11 // pred_region
          _
        $region36: #{model_forward.1} parent=11 // pred_fallthru
          _
        // Predicated region
        $region37: #{model_forward.1} parent=11 // pred_check
          %p302 = pneg %p190
        $region38: #{model_forward.1} parent=11 // pred_check_branch
          %304 = sbr.rel (%p302) target = $region40
        $region39: #{model_forward.1} parent=11 // pred_region
          _
        $region40: #{model_forward.1} parent=11 // pred_fallthru
          _
        // Predicated region
        $region41: #{model_forward.1} parent=11 // pred_check
          %p305 = pneg %p211
        $region42: #{model_forward.1} parent=11 // pred_check_branch
          %307 = sbr.rel (%p305) target = $region44
        $region43: #{model_forward.1} parent=11 // pred_region
          _
        $region44: #{model_forward.1} parent=11 // pred_fallthru
          _
        // Predicated region
        $region45: #{model_forward.1} parent=11 // pred_check
          %p308 = pneg %p232
        $region46: #{model_forward.1} parent=11 // pred_check_branch
          %310 = sbr.rel (%p308) target = $region48
        $region47: #{model_forward.1} parent=11 // pred_region
          _
        $region48: #{model_forward.1} parent=11 // pred_fallthru
          _
      $region12: #{model_forward.1} parent=5 // pred_fallthru
        _
      %p311 = scmp.lt.s32.totalorder %s17, 2
      // Predicated region
      $region49: #{model_forward.1} parent=5 // pred_check
        %p312 = pneg %p311
      $region50: #{model_forward.1} parent=5 // pred_check_branch
        %314 = sbr.rel (%p312) target = $region52
      $region51: #{model_forward.1} parent=5 // pred_region
        // Predicated region
        $region53: #{model_forward.1} parent=51 // pred_check
          %p315 = pneg %p37
        $region54: #{model_forward.1} parent=51 // pred_check_branch
          %317 = sbr.rel (%p315) target = $region56
        $region55: #{model_forward.1} parent=51 // pred_region
          %p318 = scmp.lt.s32.totalorder %s17, 1
          %s319 = scalar_select %p318, %s17, 1
          %s320 = smul.addr %s319, 8
          %s321 = scalar_lea.vmem %s0, %s320
        $region56: #{model_forward.1} parent=51 // pred_fallthru
          _
      $region52: #{model_forward.1} parent=5 // pred_fallthru
        _
      %p322 = scmp.le.s32.totalorder 1, %s17
      %p323 = scmp.lt.s32.totalorder %s17, 3
      %p324 = pnand %p322, %p323
      %p325 = pneg %p324
      // Predicated region
      $region57: #{model_forward.1} parent=5 // pred_check
        _
      $region58: #{model_forward.1} parent=5 // pred_check_branch
        %327 = sbr.rel (%p324) target = $region60
      $region59: #{model_forward.1} parent=5 // pred_region
        %s328 = ssub.s32 %s17, 1
        // Predicated region
        $region61: #{model_forward.1} parent=59 // pred_check
          %p329 = pneg %p106
        $region62: #{model_forward.1} parent=59 // pred_check_branch
          %331 = sbr.rel (%p329) target = $region64
        $region63: #{model_forward.1} parent=59 // pred_region
          %333 = dma.done [#allocation4], 2048
        $region64: #{model_forward.1} parent=59 // pred_fallthru
          _
        %p334 = scmp.lt.s32.totalorder %s22, 1
        %s335 = scalar_select %p334, %s22, 1
        %s336 = smul.addr %s335, 8
        %s337 = scalar_lea.vmem %s0, %s336
        %p338 = pneg %p43
        %p339 = pneg %p40
        %p340 = pneg %p64
        %p341 = pneg %p61
        %p342 = pneg %p85
        %p343 = pneg %p82
        %p344 = pneg %p106
        %p345 = pneg %p103
        %p346 = pneg %p127
        %p347 = pneg %p124
        %p348 = pneg %p148
        %p349 = pneg %p145
        %p350 = pneg %p169
        %p351 = pneg %p166
        %p352 = pneg %p190
        %p353 = pneg %p187
        %p354 = pneg %p211
        %p355 = pneg %p208
        %p356 = pneg %p232
        %p357 = pneg %p229
        %p358 = pneg %p258
        %p359 = pneg %p255
        %p360 = scmp.lt.s32.totalorder %s22, 1
        %s361 = scalar_select %p360, %s22, 1
        %s362 = smul.addr %s361, 8
        %s363 = scalar_lea.vmem %s10, %s362
        %p364 = scmp.lt.s32.totalorder %s22, 1
        %s365 = scalar_select %p364, %s22, 1
        %s366 = smul.addr %s365, 8
        %s367 = scalar_lea.vmem %s0, %s366
        %p368 = scmp.lt.s32.totalorder %s22, 1
        %s369 = scalar_select %p368, %s22, 1
        %s370 = smul.addr %s369, 8
        %s371 = scalar_lea.vmem %s10, %s370
        %v373 = vld [vmem:[%s367] sm:$0xff]
        %v374 = vlaneseq
        %v375 = vand.u32 %v374, 127
        %376 = vset.pattern.permute.xlu0 0
        %377 = vperm.xlu0 %376, %v373
        %v378 = vpop.permute.xlu0 %377
        %vm379 = vcmp.eq.s32.totalorder %v378, %v375
        %v380 = vsel %vm379, 1, 0
        %v381 = vcvt.s32.f32 %v380
        %v382 = vpack.c.bf16 %v381, %v381
        %v383 = vld [vmem:[%s1] sm:$0xf]
        %v384 = vld [vmem:[%s1 + $0x4] sm:$0xf]
        %v385 = vld [vmem:[%s1 + $0x8] sm:$0xf]
        %v386 = vld [vmem:[%s1 + $0xc] sm:$0xf]
        %v387 = vld [vmem:[%s2] sm:$0xff]
        %v392 = vunpack.c.l.b16 %v383
        %v393 = vunpack.c.l.b16 %v384
        %v394 = vunpack.c.l.b16 %v385
        %v395 = vunpack.c.l.b16 %v386
        %v396 = vpack.c.b16 %v393, %v392
        %v397 = vpack.c.b16 %v395, %v394
        %vm400 = vcmask 261120
        %v402 = vsel %vm400, %v382, 0
        %404 = vmatpush.bf16.msra.mxu0 0
        %405 = vmatpush.bf16.msra.mxu0 0
        %406 = vmatpush.bf16.msra.mxu0 0
        %407 = vmatpush.bf16.msra.mxu0 0
        %408 = vmatpush.bf16.msra.mxu0 0
        %409 = vmatpush.bf16.msra.mxu0 0
        %410 = vmatpush.bf16.msra.mxu0 %v397
        %411 = vmatpush.bf16.msra.mxu0 %v396
        %412 = vmatmul.bf16.gmra.mxu0 %v402
        %v413 = vpop.f32.mrf.mxu0
        %v414 = vadd.f32 %v387, %v413
        %v415 = vpop.f32.mrf.mxu0
        %416 = vdwg.mxu0
        %v417 = vld [vmem:[%s6] sm:$0xff]
        %v418 = vld [vmem:[%s6 + $0x8] sm:$0x1]
        %v419 = vpack.c.bf16 %v414, %v414
        %v420 = vld [vmem:[#allocation3] sm:$0xf]
        %v421 = vld [vmem:[#allocation3 + $0x4] sm:$0xf]
        %v422 = vld [vmem:[#allocation3 + $0x8] sm:$0xf]
        %v423 = vld [vmem:[#allocation3 + $0xc] sm:$0xf]
        %v424 = vperm.slane %v417, 0
        %v429 = vunpack.c.l.b16 %v420
        %v430 = vunpack.c.l.b16 %v421
        %v431 = vunpack.c.l.b16 %v422
        %v432 = vunpack.c.l.b16 %v423
        %v433 = vpack.c.b16 %v430, %v429
        %v434 = vpack.c.b16 %v432, %v431
        %v438 = vsel %vm400, %v419, 0
        %440 = vmatpush.bf16.msra.mxu0 0
        %441 = vmatpush.bf16.msra.mxu0 0
        %442 = vmatpush.bf16.msra.mxu0 0
        %443 = vmatpush.bf16.msra.mxu0 0
        %444 = vmatpush.bf16.msra.mxu0 0
        %445 = vmatpush.bf16.msra.mxu0 0
        %446 = vmatpush.bf16.msra.mxu0 %v434
        %447 = vmatpush.bf16.msra.mxu0 %v433
        %448 = vmatmul.bf16.gmra.mxu0 %v438
        %v449 = vpop.f32.mrf.mxu0
        %v450 = vadd.f32 %v424, %v449
        %v451 = vpop.f32.mrf.mxu0
        %452 = vdwg.mxu0
        %s453 = scalar_lea.vmem [#allocation3], 16
        %v454 = vld [vmem:[%s453] sm:$0xf]
        %v455 = vld [vmem:[%s453 + $0x4] sm:$0xf]
        %v456 = vld [vmem:[%s453 + $0x8] sm:$0xf]
        %v457 = vld [vmem:[%s453 + $0xc] sm:$0xf]
        %v458 = vperm.slane %v417, 1
        %v463 = vunpack.c.l.b16 %v454
        %v464 = vunpack.c.l.b16 %v455
        %v465 = vunpack.c.l.b16 %v456
        %v466 = vunpack.c.l.b16 %v457
        %v467 = vpack.c.b16 %v464, %v463
        %v468 = vpack.c.b16 %v466, %v465
        %471 = vmatpush.bf16.msra.mxu0 0
        %472 = vmatpush.bf16.msra.mxu0 0
        %473 = vmatpush.bf16.msra.mxu0 0
        %474 = vmatpush.bf16.msra.mxu0 0
        %475 = vmatpush.bf16.msra.mxu0 0
        %476 = vmatpush.bf16.msra.mxu0 0
        %477 = vmatpush.bf16.msra.mxu0 %v468
        %478 = vmatpush.bf16.msra.mxu0 %v467
        %479 = vmatmul.bf16.gmra.mxu0 %v438
        %v480 = vpop.f32.mrf.mxu0
        %v481 = vadd.f32 %v458, %v480
        %v482 = vpop.f32.mrf.mxu0
        %483 = vdwg.mxu0
        %s484 = scalar_lea.vmem [#allocation3], 32
        %v485 = vld [vmem:[%s484] sm:$0xf]
        %v486 = vld [vmem:[%s484 + $0x4] sm:$0xf]
        %v487 = vld [vmem:[%s484 + $0x8] sm:$0xf]
        %v488 = vld [vmem:[%s484 + $0xc] sm:$0xf]
        %v489 = vperm.slane %v417, 2
        %v494 = vunpack.c.l.b16 %v485
        %v495 = vunpack.c.l.b16 %v486
        %v496 = vunpack.c.l.b16 %v487
        %v497 = vunpack.c.l.b16 %v488
        %v498 = vpack.c.b16 %v495, %v494
        %v499 = vpack.c.b16 %v497, %v496
        %502 = vmatpush.bf16.msra.mxu0 0
        %503 = vmatpush.bf16.msra.mxu0 0
        %504 = vmatpush.bf16.msra.mxu0 0
        %505 = vmatpush.bf16.msra.mxu0 0
        %506 = vmatpush.bf16.msra.mxu0 0
        %507 = vmatpush.bf16.msra.mxu0 0
        %508 = vmatpush.bf16.msra.mxu0 %v499
        %509 = vmatpush.bf16.msra.mxu0 %v498
        %510 = vmatmul.bf16.gmra.mxu0 %v438
        %v511 = vpop.f32.mrf.mxu0
        %v512 = vadd.f32 %v489, %v511
        %v513 = vpop.f32.mrf.mxu0
        %514 = vdwg.mxu0
        %v515 = vpack.c.bf16 %v450, %v450
        %v516 = vpack.c.bf16 %v481, %v481
        %v517 = vpack.c.bf16 %v512, %v512
        %vm518 = vcmask 64512
        %v520 = vsel %vm518, %v515, 0
        %v523 = vsel %vm518, %v516, 0
        %525 = vmatpush.bf16.xpose.msra.mxu0 0
        %526 = vmatpush.bf16.xpose.msra.mxu0 0
        %527 = vmatpush.bf16.xpose.msra.mxu0 0
        %528 = vmatpush.bf16.xpose.msra.mxu0 0
        %529 = vmatpush.bf16.xpose.msra.mxu0 0
        %530 = vmatpush.bf16.xpose.msra.mxu0 0
        %531 = vmatpush.bf16.xpose.msra.mxu0 0
        %532 = vmatpush.bf16.xpose.msra.mxu0 %v523
        %533 = vmatmul.bf16.gmra.mxu0 %v520
        %v534 = vpop.f32.mrf.mxu0
        %v535 = vadd.f32 0.0, %v534
        %v536 = vpop.f32.mrf.mxu0
        %537 = vdwg.mxu0
        %v538 = vmul.f32 %v535, 0.35355338
        %v539 = vsel %vm518, %v538, -inf
        %540 = vmax.xlane.f32.xlu0 %v539
        %v541 = vpop.xlane.xlu0 %540
        %v542 = vsub.f32 %v538, %v541
        %v543 = vmul.f32 %v542, 1.442695
        %v544 = vpow.pop %v543
        %v545 = vsel %vm518, %v544, 0.0
        %546 = vadd.xlane.f32.xlu0 %v545
        %v547 = vpop.xlane.xlu0 %546
        %v548 = vrcp.pop %v547
        %v549 = vmul.f32 %v544, %v548
        %v550 = vpack.c.bf16 %v549, %v549
        %v552 = vsel %vm518, %v550, 0
        %vm554 = vcmask 1043456
        %v556 = vsel %vm554, %v517, 0
        %558 = vmatpush.bf16.msra.mxu0 0
        %559 = vmatpush.bf16.msra.mxu0 0
        %560 = vmatpush.bf16.msra.mxu0 0
        %561 = vmatpush.bf16.msra.mxu0 0
        %562 = vmatpush.bf16.msra.mxu0 0
        %563 = vmatpush.bf16.msra.mxu0 0
        %564 = vmatpush.bf16.msra.mxu0 0
        %565 = vmatpush.bf16.msra.mxu0 %v556
        %566 = vmatmul.bf16.gmra.mxu0 %v552
        %v567 = vpop.f32.mrf.mxu0
        %v568 = vadd.f32 0.0, %v567
        %v569 = vpop.f32.mrf.mxu0
        %570 = vdwg.mxu0
        %571 = vst.msk [vmem:[#allocation2] sm:$0xff] %vm518, %v568
        %v573 = vunpack.c.l.b16 %v515
        %v574 = vpack.c.b16 %v573, %v573
        %575 = vrot.lane.b32.xlu0 %v574, 120
        %v576 = vpop.permute.xlu0 %575
        %v578 = vunpack.c.l.b16 %v516
        %v579 = vpack.c.b16 %v578, %v578
        %580 = vrot.lane.b32.xlu0 %v579, 120
        %v581 = vpop.permute.xlu0 %580
        %v583 = vsel %vm518, %v576, 0
        %v586 = vsel %vm518, %v581, 0
        %588 = vmatpush.bf16.xpose.msra.mxu0 0
        %589 = vmatpush.bf16.xpose.msra.mxu0 0
        %590 = vmatpush.bf16.xpose.msra.mxu0 0
        %591 = vmatpush.bf16.xpose.msra.mxu0 0
        %592 = vmatpush.bf16.xpose.msra.mxu0 0
        %593 = vmatpush.bf16.xpose.msra.mxu0 0
        %594 = vmatpush.bf16.xpose.msra.mxu0 0
        %595 = vmatpush.bf16.xpose.msra.mxu0 %v586
        %596 = vmatmul.bf16.gmra.mxu0 %v583
        %v597 = vpop.f32.mrf.mxu0
        %v598 = vadd.f32 0.0, %v597
        %v599 = vpop.f32.mrf.mxu0
        %600 = vdwg.mxu0
        %v601 = vmul.f32 %v598, 0.35355338
        %v602 = vsel %vm518, %v601, -inf
        %603 = vmax.xlane.f32.xlu0 %v602
        %v604 = vpop.xlane.xlu0 %603
        %v605 = vsub.f32 %v601, %v604
        %v606 = vmul.f32 %v605, 1.442695
        %v607 = vpow.pop %v606
        %v608 = vsel %vm518, %v607, 0.0
        %609 = vadd.xlane.f32.xlu0 %v608
        %v610 = vpop.xlane.xlu0 %609
        %v611 = vrcp.pop %v610
        %v612 = vmul.f32 %v607, %v611
        %v613 = vpack.c.bf16 %v612, %v612
        %v615 = vunpack.c.l.b16 %v517
        %v616 = vpack.c.b16 %v615, %v615
        %617 = vrot.lane.b32.xlu0 %v616, 120
        %v618 = vpop.permute.xlu0 %617
        %v620 = vsel %vm518, %v613, 0
        %v623 = vsel %vm554, %v618, 0
        %625 = vmatpush.bf16.msra.mxu0 0
        %626 = vmatpush.bf16.msra.mxu0 0
        %627 = vmatpush.bf16.msra.mxu0 0
        %628 = vmatpush.bf16.msra.mxu0 0
        %629 = vmatpush.bf16.msra.mxu0 0
        %630 = vmatpush.bf16.msra.mxu0 0
        %631 = vmatpush.bf16.msra.mxu0 0
        %632 = vmatpush.bf16.msra.mxu0 %v623
        %633 = vmatmul.bf16.gmra.mxu0 %v620
        %v634 = vpop.f32.mrf.mxu0
        %v635 = vadd.f32 0.0, %v634
        %v636 = vpop.f32.mrf.mxu0
        %637 = vdwg.mxu0
        %639 = vrot.lane.b32.xlu0 %v635, 8
        %v640 = vpop.permute.xlu0 %639
        %vm642 = vcmask 130112
        %643 = vst.msk [vmem:[#allocation2] sm:$0xff] %vm642, %v640
        %644 = vrot.lane.b32.xlu0 %v574, 112
        %v645 = vpop.permute.xlu0 %644
        %646 = vrot.lane.b32.xlu0 %v579, 112
        %v647 = vpop.permute.xlu0 %646
        %v649 = vsel %vm518, %v645, 0
        %v652 = vsel %vm518, %v647, 0
        %654 = vmatpush.bf16.xpose.msra.mxu0 0
        %655 = vmatpush.bf16.xpose.msra.mxu0 0
        %656 = vmatpush.bf16.xpose.msra.mxu0 0
        %657 = vmatpush.bf16.xpose.msra.mxu0 0
        %658 = vmatpush.bf16.xpose.msra.mxu0 0
        %659 = vmatpush.bf16.xpose.msra.mxu0 0
        %660 = vmatpush.bf16.xpose.msra.mxu0 0
        %661 = vmatpush.bf16.xpose.msra.mxu0 %v652
        %662 = vmatmul.bf16.gmra.mxu0 %v649
        %v663 = vpop.f32.mrf.mxu0
        %v664 = vadd.f32 0.0, %v663
        %v665 = vpop.f32.mrf.mxu0
        %666 = vdwg.mxu0
        %v667 = vmul.f32 %v664, 0.35355338
        %v668 = vsel %vm518, %v667, -inf
        %669 = vmax.xlane.f32.xlu0 %v668
        %v670 = vpop.xlane.xlu0 %669
        %v671 = vsub.f32 %v667, %v670
        %v672 = vmul.f32 %v671, 1.442695
        %v673 = vpow.pop %v672
        %v674 = vsel %vm518, %v673, 0.0
        %675 = vadd.xlane.f32.xlu0 %v674
        %v676 = vpop.xlane.xlu0 %675
        %v677 = vrcp.pop %v676
        %v678 = vmul.f32 %v673, %v677
        %v679 = vpack.c.bf16 %v678, %v678
        %680 = vrot.lane.b32.xlu0 %v616, 112
        %v681 = vpop.permute.xlu0 %680
        %v683 = vsel %vm518, %v679, 0
        %v686 = vsel %vm554, %v681, 0
        %688 = vmatpush.bf16.msra.mxu0 0
        %689 = vmatpush.bf16.msra.mxu0 0
        %690 = vmatpush.bf16.msra.mxu0 0
        %691 = vmatpush.bf16.msra.mxu0 0
        %692 = vmatpush.bf16.msra.mxu0 0
        %693 = vmatpush.bf16.msra.mxu0 0
        %694 = vmatpush.bf16.msra.mxu0 0
        %695 = vmatpush.bf16.msra.mxu0 %v686
        %696 = vmatmul.bf16.gmra.mxu0 %v683
        %v697 = vpop.f32.mrf.mxu0
        %v698 = vadd.f32 0.0, %v697
        %v699 = vpop.f32.mrf.mxu0
        %700 = vdwg.mxu0
        %702 = vrot.lane.b32.xlu0 %v698, 16
        %v703 = vpop.permute.xlu0 %702
        %vm705 = vcmask 195712
        %706 = vst.msk [vmem:[#allocation2] sm:$0xff] %vm705, %v703
        %707 = vrot.lane.b32.xlu0 %v574, 104
        %v708 = vpop.permute.xlu0 %707
        %709 = vrot.lane.b32.xlu0 %v579, 104
        %v710 = vpop.permute.xlu0 %709
        %v712 = vsel %vm518, %v708, 0
        %v715 = vsel %vm518, %v710, 0
        %717 = vmatpush.bf16.xpose.msra.mxu0 0
        %718 = vmatpush.bf16.xpose.msra.mxu0 0
        %719 = vmatpush.bf16.xpose.msra.mxu0 0
        %720 = vmatpush.bf16.xpose.msra.mxu0 0
        %721 = vmatpush.bf16.xpose.msra.mxu0 0
        %722 = vmatpush.bf16.xpose.msra.mxu0 0
        %723 = vmatpush.bf16.xpose.msra.mxu0 0
        %724 = vmatpush.bf16.xpose.msra.mxu0 %v715
        %725 = vmatmul.bf16.gmra.mxu0 %v712
        %v726 = vpop.f32.mrf.mxu0
        %v727 = vadd.f32 0.0, %v726
        %v728 = vpop.f32.mrf.mxu0
        %729 = vdwg.mxu0
        %v730 = vmul.f32 %v727, 0.35355338
        %v731 = vsel %vm518, %v730, -inf
        %732 = vmax.xlane.f32.xlu0 %v731
        %v733 = vpop.xlane.xlu0 %732
        %v734 = vsub.f32 %v730, %v733
        %v735 = vmul.f32 %v734, 1.442695
        %v736 = vpow.pop %v735
        %v737 = vsel %vm518, %v736, 0.0
        %738 = vadd.xlane.f32.xlu0 %v737
        %v739 = vpop.xlane.xlu0 %738
        %v740 = vrcp.pop %v739
        %v741 = vmul.f32 %v736, %v740
        %v742 = vpack.c.bf16 %v741, %v741
        %743 = vrot.lane.b32.xlu0 %v616, 104
        %v744 = vpop.permute.xlu0 %743
        %v746 = vsel %vm518, %v742, 0
        %v749 = vsel %vm554, %v744, 0
        %751 = vmatpush.bf16.msra.mxu0 0
        %752 = vmatpush.bf16.msra.mxu0 0
        %753 = vmatpush.bf16.msra.mxu0 0
        %754 = vmatpush.bf16.msra.mxu0 0
        %755 = vmatpush.bf16.msra.mxu0 0
        %756 = vmatpush.bf16.msra.mxu0 0
        %757 = vmatpush.bf16.msra.mxu0 0
        %758 = vmatpush.bf16.msra.mxu0 %v749
        %759 = vmatmul.bf16.gmra.mxu0 %v746
        %v760 = vpop.f32.mrf.mxu0
        %v761 = vadd.f32 0.0, %v760
        %v762 = vpop.f32.mrf.mxu0
        %763 = vdwg.mxu0
        %765 = vrot.lane.b32.xlu0 %v761, 24
        %v766 = vpop.permute.xlu0 %765
        %vm768 = vcmask 261312
        %769 = vst.msk [vmem:[#allocation2] sm:$0xff] %vm768, %v766
        %v770 = vld [vmem:[#allocation2] sm:$0xff]
        %v771 = vpack.c.bf16 %v770, %v770
        %s772 = scalar_lea.vmem [#allocation3], 48
        %v773 = vld [vmem:[%s772] sm:$0xf]
        %v774 = vld [vmem:[%s772 + $0x4] sm:$0xf]
        %v775 = vld [vmem:[%s772 + $0x8] sm:$0xf]
        %v776 = vld [vmem:[%s772 + $0xc] sm:$0xf]
        %v777 = vperm.slane %v417, 3
        %v782 = vunpack.c.l.b16 %v773
        %v783 = vunpack.c.l.b16 %v774
        %v784 = vunpack.c.l.b16 %v775
        %v785 = vunpack.c.l.b16 %v776
        %v786 = vpack.c.b16 %v783, %v782
        %v787 = vpack.c.b16 %v785, %v784
        %v791 = vsel %vm400, %v771, 0
        %793 = vmatpush.bf16.msra.mxu0 0
        %794 = vmatpush.bf16.msra.mxu0 0
        %795 = vmatpush.bf16.msra.mxu0 0
        %796 = vmatpush.bf16.msra.mxu0 0
        %797 = vmatpush.bf16.msra.mxu0 0
        %798 = vmatpush.bf16.msra.mxu0 0
        %799 = vmatpush.bf16.msra.mxu0 %v787
        %800 = vmatpush.bf16.msra.mxu0 %v786
        %801 = vmatmul.bf16.gmra.mxu0 %v791
        %v802 = vpop.f32.mrf.mxu0
        %v803 = vadd.f32 %v777, %v802
        %v804 = vpop.f32.mrf.mxu0
        %805 = vdwg.mxu0
        %v806 = vadd.f32 %v414, %v803
        %v807 = vsel %vm400, %v806, 0.0
        %808 = vadd.xlane.f32.xlu0 %v807
        %v809 = vpop.xlane.xlu0 %808
        %v810 = vrcp.pop 32.0
        %v811 = vmul.f32 32.0, %v810
        %v812 = vsub.f32 1.0, %v811
        %v813 = vmul.f32 %v810, %v812
        %v814 = vadd.f32 %v810, %v813
        %vm815 = vweird.f32 %v810
        %v816 = vsel %vm815, %v810, %v814
        %v817 = vmul.f32 %v809, %v816
        %v818 = vsub.f32 %v806, %v817
        %v819 = vmul.f32 %v818, %v818
        %v820 = vsel %vm400, %v819, 0.0
        %821 = vadd.xlane.f32.xlu0 %v820
        %v822 = vpop.xlane.xlu0 %821
        %v823 = vmul.f32 %v822, %v816
        %v824 = vadd.f32 %v823, 1e-05
        %v825 = vrsqrt.pop %v824
        %v826 = vmul.f32 %v825, %v824
        %v827 = vmul.f32 %v826, %v825
        %v828 = vmul.f32 0.5, %v827
        %v829 = vsub.f32 1.5, %v828
        %v830 = vmul.f32 %v825, %v829
        %vm831 = vweird.f32 %v824
        %vm832 = vweird.f32 %v825
        %vm833 = vmor %vm831, %vm832
        %v834 = vsel %vm833, %v825, %v830
        %v835 = vmul.f32 %v818, %v834
        %v836 = vperm.slane %v417, 4
        %v837 = vmul.f32 %v835, %v836
        %v838 = vperm.slane %v417, 5
        %v839 = vadd.f32 %v837, %v838
        %v840 = vpack.c.bf16 %v839, %v839
        %v841 = vld [vmem:[%s4] sm:$0xf]
        %v842 = vld [vmem:[%s4 + $0x4] sm:$0xf]
        %v843 = vld [vmem:[%s4 + $0x8] sm:$0xf]
        %v844 = vld [vmem:[%s4 + $0xc] sm:$0xf]
        %v845 = vld [vmem:[%s7] sm:$0x1]
        %v847 = vperm.slane %v845, 0
        %v853 = vunpack.c.l.b16 %v841
        %v854 = vunpack.c.l.b16 %v842
        %v855 = vunpack.c.l.b16 %v843
        %v856 = vunpack.c.l.b16 %v844
        %v857 = vpack.c.b16 %v854, %v853
        %v858 = vpack.c.b16 %v856, %v855
        %v862 = vsel %vm400, %v840, 0
        %864 = vmatpush.bf16.msra.mxu0 0
        %865 = vmatpush.bf16.msra.mxu0 0
        %866 = vmatpush.bf16.msra.mxu0 0
        %867 = vmatpush.bf16.msra.mxu0 0
        %868 = vmatpush.bf16.msra.mxu0 0
        %869 = vmatpush.bf16.msra.mxu0 0
        %870 = vmatpush.bf16.msra.mxu0 %v858
        %871 = vmatpush.bf16.msra.mxu0 %v857
        %872 = vmatmul.bf16.gmra.mxu0 %v862
        %v873 = vpop.f32.mrf.mxu0
        %v874 = vadd.f32 %v847, %v873
        %v875 = vpop.f32.mrf.mxu0
        %876 = vdwg.mxu0
        %v877 = vmax.f32 %v874, 0.0
        %v878 = vpack.c.bf16 %v877, %v877
        %v879 = vld [vmem:[%s5] sm:$0xf]
        %v880 = vld [vmem:[%s5 + $0x4] sm:$0xf]
        %v881 = vld [vmem:[%s5 + $0x8] sm:$0xf]
        %v882 = vld [vmem:[%s5 + $0xc] sm:$0xf]
        %v883 = vld [vmem:[%s5 + $0x10] sm:$0xf]
        %v884 = vld [vmem:[%s5 + $0x14] sm:$0xf]
        %v885 = vld [vmem:[%s5 + $0x18] sm:$0xf]
        %v886 = vld [vmem:[%s5 + $0x1c] sm:$0xf]
        %v887 = vperm.slane %v417, 6
        %v896 = vunpack.c.l.b16 %v879
        %v897 = vunpack.c.l.b16 %v880
        %v898 = vunpack.c.l.b16 %v881
        %v899 = vunpack.c.l.b16 %v882
        %v900 = vunpack.c.l.b16 %v883
        %v901 = vunpack.c.l.b16 %v884
        %v902 = vunpack.c.l.b16 %v885
        %v903 = vunpack.c.l.b16 %v886
        %v904 = vpack.c.b16 %v897, %v896
        %v905 = vpack.c.b16 %v899, %v898
        %v906 = vpack.c.b16 %v901, %v900
        %v907 = vpack.c.b16 %v903, %v902
        %vm912 = vcmask 523264
        %v914 = vsel %vm912, %v878, 0
        %916 = vmatpush.bf16.msra.mxu0 0
        %917 = vmatpush.bf16.msra.mxu0 0
        %918 = vmatpush.bf16.msra.mxu0 0
        %919 = vmatpush.bf16.msra.mxu0 0
        %920 = vmatpush.bf16.msra.mxu0 %v907
        %921 = vmatpush.bf16.msra.mxu0 %v906
        %922 = vmatpush.bf16.msra.mxu0 %v905
        %923 = vmatpush.bf16.msra.mxu0 %v904
        %924 = vmatmul.bf16.gmra.mxu0 %v914
        %v925 = vpop.f32.mrf.mxu0
        %v926 = vadd.f32 %v887, %v925
        %v927 = vpop.f32.mrf.mxu0
        %928 = vdwg.mxu0
        %v929 = vadd.f32 %v839, %v926
        %v930 = vsel %vm400, %v929, 0.0
        %931 = vadd.xlane.f32.xlu0 %v930
        %v932 = vpop.xlane.xlu0 %931
        %v933 = vmul.f32 %v932, %v816
        %v934 = vsub.f32 %v929, %v933
        %v935 = vmul.f32 %v934, %v934
        %v936 = vsel %vm400, %v935, 0.0
        %937 = vadd.xlane.f32.xlu0 %v936
        %v938 = vpop.xlane.xlu0 %937
        %v939 = vmul.f32 %v938, %v816
        %v940 = vadd.f32 %v939, 1e-05
        %v941 = vrsqrt.pop %v940
        %v942 = vmul.f32 %v941, %v940
        %v943 = vmul.f32 %v942, %v941
        %v944 = vmul.f32 0.5, %v943
        %v945 = vsub.f32 1.5, %v944
        %v946 = vmul.f32 %v941, %v945
        %vm947 = vweird.f32 %v940
        %vm948 = vweird.f32 %v941
        %vm949 = vmor %vm947, %vm948
        %v950 = vsel %vm949, %v941, %v946
        %v951 = vmul.f32 %v934, %v950
        %v952 = vperm.slane %v417, 7
        %v953 = vmul.f32 %v951, %v952
        %v954 = vperm.slane %v418, 0
        %v955 = vadd.f32 %v953, %v954
        %s956 = scalar_lea.vmem %s6, 16
        %v957 = vld [vmem:[%s956] sm:$0xff]
        %v958 = vld [vmem:[%s956 + $0x8] sm:$0x1]
        %v959 = vpack.c.bf16 %v955, %v955
        %s960 = scalar_lea.vmem [#allocation3], 64
        %v961 = vld [vmem:[%s960] sm:$0xf]
        %v962 = vld [vmem:[%s960 + $0x4] sm:$0xf]
        %v963 = vld [vmem:[%s960 + $0x8] sm:$0xf]
        %v964 = vld [vmem:[%s960 + $0xc] sm:$0xf]
        %v965 = vperm.slane %v957, 0
        %v970 = vunpack.c.l.b16 %v961
        %v971 = vunpack.c.l.b16 %v962
        %v972 = vunpack.c.l.b16 %v963
        %v973 = vunpack.c.l.b16 %v964
        %v974 = vpack.c.b16 %v971, %v970
        %v975 = vpack.c.b16 %v973, %v972
        %v979 = vsel %vm400, %v959, 0
        %981 = vmatpush.bf16.msra.mxu0 0
        %982 = vmatpush.bf16.msra.mxu0 0
        %983 = vmatpush.bf16.msra.mxu0 0
        %984 = vmatpush.bf16.msra.mxu0 0
        %985 = vmatpush.bf16.msra.mxu0 0
        %986 = vmatpush.bf16.msra.mxu0 0
        %987 = vmatpush.bf16.msra.mxu0 %v975
        %988 = vmatpush.bf16.msra.mxu0 %v974
        %989 = vmatmul.bf16.gmra.mxu0 %v979
        %v990 = vpop.f32.mrf.mxu0
        %v991 = vadd.f32 %v965, %v990
        %v992 = vpop.f32.mrf.mxu0
        %993 = vdwg.mxu0
        %s994 = scalar_lea.vmem [#allocation3], 80
        %v995 = vld [vmem:[%s994] sm:$0xf]
        %v996 = vld [vmem:[%s994 + $0x4] sm:$0xf]
        %v997 = vld [vmem:[%s994 + $0x8] sm:$0xf]
        %v998 = vld [vmem:[%s994 + $0xc] sm:$0xf]
        %v999 = vperm.slane %v957, 1
        %v1004 = vunpack.c.l.b16 %v995
        %v1005 = vunpack.c.l.b16 %v996
        %v1006 = vunpack.c.l.b16 %v997
        %v1007 = vunpack.c.l.b16 %v998
        %v1008 = vpack.c.b16 %v1005, %v1004
        %v1009 = vpack.c.b16 %v1007, %v1006
        %1012 = vmatpush.bf16.msra.mxu0 0
        %1013 = vmatpush.bf16.msra.mxu0 0
        %1014 = vmatpush.bf16.msra.mxu0 0
        %1015 = vmatpush.bf16.msra.mxu0 0
        %1016 = vmatpush.bf16.msra.mxu0 0
        %1017 = vmatpush.bf16.msra.mxu0 0
        %1018 = vmatpush.bf16.msra.mxu0 %v1009
        %1019 = vmatpush.bf16.msra.mxu0 %v1008
        %1020 = vmatmul.bf16.gmra.mxu0 %v979
        %v1021 = vpop.f32.mrf.mxu0
        %v1022 = vadd.f32 %v999, %v1021
        %v1023 = vpop.f32.mrf.mxu0
        %1024 = vdwg.mxu0
        %s1025 = scalar_lea.vmem [#allocation3], 96
        %v1026 = vld [vmem:[%s1025] sm:$0xf]
        %v1027 = vld [vmem:[%s1025 + $0x4] sm:$0xf]
        %v1028 = vld [vmem:[%s1025 + $0x8] sm:$0xf]
        %v1029 = vld [vmem:[%s1025 + $0xc] sm:$0xf]
        %v1030 = vperm.slane %v957, 2
        %v1035 = vunpack.c.l.b16 %v1026
        %v1036 = vunpack.c.l.b16 %v1027
        %v1037 = vunpack.c.l.b16 %v1028
        %v1038 = vunpack.c.l.b16 %v1029
        %v1039 = vpack.c.b16 %v1036, %v1035
        %v1040 = vpack.c.b16 %v1038, %v1037
        %1043 = vmatpush.bf16.msra.mxu0 0
        %1044 = vmatpush.bf16.msra.mxu0 0
        %1045 = vmatpush.bf16.msra.mxu0 0
        %1046 = vmatpush.bf16.msra.mxu0 0
        %1047 = vmatpush.bf16.msra.mxu0 0
        %1048 = vmatpush.bf16.msra.mxu0 0
        %1049 = vmatpush.bf16.msra.mxu0 %v1040
        %1050 = vmatpush.bf16.msra.mxu0 %v1039
        %1051 = vmatmul.bf16.gmra.mxu0 %v979
        %v1052 = vpop.f32.mrf.mxu0
        %v1053 = vadd.f32 %v1030, %v1052
        %v1054 = vpop.f32.mrf.mxu0
        %1055 = vdwg.mxu0
        %v1056 = vpack.c.bf16 %v991, %v991
        %v1057 = vpack.c.bf16 %v1022, %v1022
        %v1058 = vpack.c.bf16 %v1053, %v1053
        %v1060 = vsel %vm518, %v1056, 0
        %v1063 = vsel %vm518, %v1057, 0
        %1065 = vmatpush.bf16.xpose.msra.mxu0 0
        %1066 = vmatpush.bf16.xpose.msra.mxu0 0
        %1067 = vmatpush.bf16.xpose.msra.mxu0 0
        %1068 = vmatpush.bf16.xpose.msra.mxu0 0
        %1069 = vmatpush.bf16.xpose.msra.mxu0 0
        %1070 = vmatpush.bf16.xpose.msra.mxu0 0
        %1071 = vmatpush.bf16.xpose.msra.mxu0 0
        %1072 = vmatpush.bf16.xpose.msra.mxu0 %v1063
        %1073 = vmatmul.bf16.gmra.mxu0 %v1060
        %v1074 = vpop.f32.mrf.mxu0
        %v1075 = vadd.f32 0.0, %v1074
        %v1076 = vpop.f32.mrf.mxu0
        %1077 = vdwg.mxu0
        %v1078 = vmul.f32 %v1075, 0.35355338
        %v1079 = vsel %vm518, %v1078, -inf
        %1080 = vmax.xlane.f32.xlu0 %v1079
        %v1081 = vpop.xlane.xlu0 %1080
        %v1082 = vsub.f32 %v1078, %v1081
        %v1083 = vmul.f32 %v1082, 1.442695
        %v1084 = vpow.pop %v1083
        %v1085 = vsel %vm518, %v1084, 0.0
        %1086 = vadd.xlane.f32.xlu0 %v1085
        %v1087 = vpop.xlane.xlu0 %1086
        %v1088 = vrcp.pop %v1087
        %v1089 = vmul.f32 %v1084, %v1088
        %v1090 = vpack.c.bf16 %v1089, %v1089
        %v1092 = vsel %vm518, %v1090, 0
        %v1095 = vsel %vm554, %v1058, 0
        %1097 = vmatpush.bf16.msra.mxu0 0
        %1098 = vmatpush.bf16.msra.mxu0 0
        %1099 = vmatpush.bf16.msra.mxu0 0
        %1100 = vmatpush.bf16.msra.mxu0 0
        %1101 = vmatpush.bf16.msra.mxu0 0
        %1102 = vmatpush.bf16.msra.mxu0 0
        %1103 = vmatpush.bf16.msra.mxu0 0
        %1104 = vmatpush.bf16.msra.mxu0 %v1095
        %1105 = vmatmul.bf16.gmra.mxu0 %v1092
        %v1106 = vpop.f32.mrf.mxu0
        %v1107 = vadd.f32 0.0, %v1106
        %v1108 = vpop.f32.mrf.mxu0
        %1109 = vdwg.mxu0
        %1110 = vst.msk [vmem:[#allocation2] sm:$0xff] %vm518, %v1107
        %v1112 = vunpack.c.l.b16 %v1056
        %v1113 = vpack.c.b16 %v1112, %v1112
        %1114 = vrot.lane.b32.xlu0 %v1113, 120
        %v1115 = vpop.permute.xlu0 %1114
        %v1117 = vunpack.c.l.b16 %v1057
        %v1118 = vpack.c.b16 %v1117, %v1117
        %1119 = vrot.lane.b32.xlu0 %v1118, 120
        %v1120 = vpop.permute.xlu0 %1119
        %v1122 = vsel %vm518, %v1115, 0
        %v1125 = vsel %vm518, %v1120, 0
        %1127 = vmatpush.bf16.xpose.msra.mxu0 0
        %1128 = vmatpush.bf16.xpose.msra.mxu0 0
        %1129 = vmatpush.bf16.xpose.msra.mxu0 0
        %1130 = vmatpush.bf16.xpose.msra.mxu0 0
        %1131 = vmatpush.bf16.xpose.msra.mxu0 0
        %1132 = vmatpush.bf16.xpose.msra.mxu0 0
        %1133 = vmatpush.bf16.xpose.msra.mxu0 0
        %1134 = vmatpush.bf16.xpose.msra.mxu0 %v1125
        %1135 = vmatmul.bf16.gmra.mxu0 %v1122
        %v1136 = vpop.f32.mrf.mxu0
        %v1137 = vadd.f32 0.0, %v1136
        %v1138 = vpop.f32.mrf.mxu0
        %1139 = vdwg.mxu0
        %v1140 = vmul.f32 %v1137, 0.35355338
        %v1141 = vsel %vm518, %v1140, -inf
        %1142 = vmax.xlane.f32.xlu0 %v1141
        %v1143 = vpop.xlane.xlu0 %1142
        %v1144 = vsub.f32 %v1140, %v1143
        %v1145 = vmul.f32 %v1144, 1.442695
        %v1146 = vpow.pop %v1145
        %v1147 = vsel %vm518, %v1146, 0.0
        %1148 = vadd.xlane.f32.xlu0 %v1147
        %v1149 = vpop.xlane.xlu0 %1148
        %v1150 = vrcp.pop %v1149
        %v1151 = vmul.f32 %v1146, %v1150
        %v1152 = vpack.c.bf16 %v1151, %v1151
        %v1154 = vunpack.c.l.b16 %v1058
        %v1155 = vpack.c.b16 %v1154, %v1154
        %1156 = vrot.lane.b32.xlu0 %v1155, 120
        %v1157 = vpop.permute.xlu0 %1156
        %v1159 = vsel %vm518, %v1152, 0
        %v1162 = vsel %vm554, %v1157, 0
        %1164 = vmatpush.bf16.msra.mxu0 0
        %1165 = vmatpush.bf16.msra.mxu0 0
        %1166 = vmatpush.bf16.msra.mxu0 0
        %1167 = vmatpush.bf16.msra.mxu0 0
        %1168 = vmatpush.bf16.msra.mxu0 0
        %1169 = vmatpush.bf16.msra.mxu0 0
        %1170 = vmatpush.bf16.msra.mxu0 0
        %1171 = vmatpush.bf16.msra.mxu0 %v1162
        %1172 = vmatmul.bf16.gmra.mxu0 %v1159
        %v1173 = vpop.f32.mrf.mxu0
        %v1174 = vadd.f32 0.0, %v1173
        %v1175 = vpop.f32.mrf.mxu0
        %1176 = vdwg.mxu0
        %1178 = vrot.lane.b32.xlu0 %v1174, 8
        %v1179 = vpop.permute.xlu0 %1178
        %1181 = vst.msk [vmem:[#allocation2] sm:$0xff] %vm642, %v1179
        %1182 = vrot.lane.b32.xlu0 %v1113, 112
        %v1183 = vpop.permute.xlu0 %1182
        %1184 = vrot.lane.b32.xlu0 %v1118, 112
        %v1185 = vpop.permute.xlu0 %1184
        %v1187 = vsel %vm518, %v1183, 0
        %v1190 = vsel %vm518, %v1185, 0
        %1192 = vmatpush.bf16.xpose.msra.mxu0 0
        %1193 = vmatpush.bf16.xpose.msra.mxu0 0
        %1194 = vmatpush.bf16.xpose.msra.mxu0 0
        %1195 = vmatpush.bf16.xpose.msra.mxu0 0
        %1196 = vmatpush.bf16.xpose.msra.mxu0 0
        %1197 = vmatpush.bf16.xpose.msra.mxu0 0
        %1198 = vmatpush.bf16.xpose.msra.mxu0 0
        %1199 = vmatpush.bf16.xpose.msra.mxu0 %v1190
        %1200 = vmatmul.bf16.gmra.mxu0 %v1187
        %v1201 = vpop.f32.mrf.mxu0
        %v1202 = vadd.f32 0.0, %v1201
        %v1203 = vpop.f32.mrf.mxu0
        %1204 = vdwg.mxu0
        %v1205 = vmul.f32 %v1202, 0.35355338
        %v1206 = vsel %vm518, %v1205, -inf
        %1207 = vmax.xlane.f32.xlu0 %v1206
        %v1208 = vpop.xlane.xlu0 %1207
        %v1209 = vsub.f32 %v1205, %v1208
        %v1210 = vmul.f32 %v1209, 1.442695
        %v1211 = vpow.pop %v1210
        %v1212 = vsel %vm518, %v1211, 0.0
        %1213 = vadd.xlane.f32.xlu0 %v1212
        %v1214 = vpop.xlane.xlu0 %1213
        %v1215 = vrcp.pop %v1214
        %v1216 = vmul.f32 %v1211, %v1215
        %v1217 = vpack.c.bf16 %v1216, %v1216
        %1218 = vrot.lane.b32.xlu0 %v1155, 112
        %v1219 = vpop.permute.xlu0 %1218
        %v1221 = vsel %vm518, %v1217, 0
        %v1224 = vsel %vm554, %v1219, 0
        %1226 = vmatpush.bf16.msra.mxu0 0
        %1227 = vmatpush.bf16.msra.mxu0 0
        %1228 = vmatpush.bf16.msra.mxu0 0
        %1229 = vmatpush.bf16.msra.mxu0 0
        %1230 = vmatpush.bf16.msra.mxu0 0
        %1231 = vmatpush.bf16.msra.mxu0 0
        %1232 = vmatpush.bf16.msra.mxu0 0
        %1233 = vmatpush.bf16.msra.mxu0 %v1224
        %1234 = vmatmul.bf16.gmra.mxu0 %v1221
        %v1235 = vpop.f32.mrf.mxu0
        %v1236 = vadd.f32 0.0, %v1235
        %v1237 = vpop.f32.mrf.mxu0
        %1238 = vdwg.mxu0
        %1240 = vrot.lane.b32.xlu0 %v1236, 16
        %v1241 = vpop.permute.xlu0 %1240
        %1243 = vst.msk [vmem:[#allocation2] sm:$0xff] %vm705, %v1241
        %1244 = vrot.lane.b32.xlu0 %v1113, 104
        %v1245 = vpop.permute.xlu0 %1244
        %1246 = vrot.lane.b32.xlu0 %v1118, 104
        %v1247 = vpop.permute.xlu0 %1246
        %v1249 = vsel %vm518, %v1245, 0
        %v1252 = vsel %vm518, %v1247, 0
        %1254 = vmatpush.bf16.xpose.msra.mxu0 0
        %1255 = vmatpush.bf16.xpose.msra.mxu0 0
        %1256 = vmatpush.bf16.xpose.msra.mxu0 0
        %1257 = vmatpush.bf16.xpose.msra.mxu0 0
        %1258 = vmatpush.bf16.xpose.msra.mxu0 0
        %1259 = vmatpush.bf16.xpose.msra.mxu0 0
        %1260 = vmatpush.bf16.xpose.msra.mxu0 0
        %1261 = vmatpush.bf16.xpose.msra.mxu0 %v1252
        %1262 = vmatmul.bf16.gmra.mxu0 %v1249
        %v1263 = vpop.f32.mrf.mxu0
        %v1264 = vadd.f32 0.0, %v1263
        %v1265 = vpop.f32.mrf.mxu0
        %1266 = vdwg.mxu0
        %v1267 = vmul.f32 %v1264, 0.35355338
        %v1268 = vsel %vm518, %v1267, -inf
        %1269 = vmax.xlane.f32.xlu0 %v1268
        %v1270 = vpop.xlane.xlu0 %1269
        %v1271 = vsub.f32 %v1267, %v1270
        %v1272 = vmul.f32 %v1271, 1.442695
        %v1273 = vpow.pop %v1272
        %v1274 = vsel %vm518, %v1273, 0.0
        %1275 = vadd.xlane.f32.xlu0 %v1274
        %v1276 = vpop.xlane.xlu0 %1275
        %v1277 = vrcp.pop %v1276
        %v1278 = vmul.f32 %v1273, %v1277
        %v1279 = vpack.c.bf16 %v1278, %v1278
        %1280 = vrot.lane.b32.xlu0 %v1155, 104
        %v1281 = vpop.permute.xlu0 %1280
        %v1283 = vsel %vm518, %v1279, 0
        %v1286 = vsel %vm554, %v1281, 0
        %1288 = vmatpush.bf16.msra.mxu0 0
        %1289 = vmatpush.bf16.msra.mxu0 0
        %1290 = vmatpush.bf16.msra.mxu0 0
        %1291 = vmatpush.bf16.msra.mxu0 0
        %1292 = vmatpush.bf16.msra.mxu0 0
        %1293 = vmatpush.bf16.msra.mxu0 0
        %1294 = vmatpush.bf16.msra.mxu0 0
        %1295 = vmatpush.bf16.msra.mxu0 %v1286
        %1296 = vmatmul.bf16.gmra.mxu0 %v1283
        %v1297 = vpop.f32.mrf.mxu0
        %v1298 = vadd.f32 0.0, %v1297
        %v1299 = vpop.f32.mrf.mxu0
        %1300 = vdwg.mxu0
        %1302 = vrot.lane.b32.xlu0 %v1298, 24
        %v1303 = vpop.permute.xlu0 %1302
        %1305 = vst.msk [vmem:[#allocation2] sm:$0xff] %vm768, %v1303
        %v1306 = vld [vmem:[#allocation2] sm:$0xff]
        %v1307 = vpack.c.bf16 %v1306, %v1306
        %s1308 = scalar_lea.vmem [#allocation3], 112
        %v1309 = vld [vmem:[%s1308] sm:$0xf]
        %v1310 = vld [vmem:[%s1308 + $0x4] sm:$0xf]
        %v1311 = vld [vmem:[%s1308 + $0x8] sm:$0xf]
        %v1312 = vld [vmem:[%s1308 + $0xc] sm:$0xf]
        %v1313 = vperm.slane %v957, 3
        %v1318 = vunpack.c.l.b16 %v1309
        %v1319 = vunpack.c.l.b16 %v1310
        %v1320 = vunpack.c.l.b16 %v1311
        %v1321 = vunpack.c.l.b16 %v1312
        %v1322 = vpack.c.b16 %v1319, %v1318
        %v1323 = vpack.c.b16 %v1321, %v1320
        %v1327 = vsel %vm400, %v1307, 0
        %1329 = vmatpush.bf16.msra.mxu0 0
        %1330 = vmatpush.bf16.msra.mxu0 0
        %1331 = vmatpush.bf16.msra.mxu0 0
        %1332 = vmatpush.bf16.msra.mxu0 0
        %1333 = vmatpush.bf16.msra.mxu0 0
        %1334 = vmatpush.bf16.msra.mxu0 0
        %1335 = vmatpush.bf16.msra.mxu0 %v1323
        %1336 = vmatpush.bf16.msra.mxu0 %v1322
        %1337 = vmatmul.bf16.gmra.mxu0 %v1327
        %v1338 = vpop.f32.mrf.mxu0
        %v1339 = vadd.f32 %v1313, %v1338
        %v1340 = vpop.f32.mrf.mxu0
        %1341 = vdwg.mxu0
        %v1342 = vadd.f32 %v955, %v1339
        %v1343 = vsel %vm400, %v1342, 0.0
        %1344 = vadd.xlane.f32.xlu0 %v1343
        %v1345 = vpop.xlane.xlu0 %1344
        %v1346 = vmul.f32 %v1345, %v816
        %v1347 = vsub.f32 %v1342, %v1346
        %v1348 = vmul.f32 %v1347, %v1347
        %v1349 = vsel %vm400, %v1348, 0.0
        %1350 = vadd.xlane.f32.xlu0 %v1349
        %v1351 = vpop.xlane.xlu0 %1350
        %v1352 = vmul.f32 %v1351, %v816
        %v1353 = vadd.f32 %v1352, 1e-05
        %v1354 = vrsqrt.pop %v1353
        %v1355 = vmul.f32 %v1354, %v1353
        %v1356 = vmul.f32 %v1355, %v1354
        %v1357 = vmul.f32 0.5, %v1356
        %v1358 = vsub.f32 1.5, %v1357
        %v1359 = vmul.f32 %v1354, %v1358
        %vm1360 = vweird.f32 %v1353
        %vm1361 = vweird.f32 %v1354
        %vm1362 = vmor %vm1360, %vm1361
        %v1363 = vsel %vm1362, %v1354, %v1359
        %v1364 = vmul.f32 %v1347, %v1363
        %v1365 = vperm.slane %v957, 4
        %v1366 = vmul.f32 %v1364, %v1365
        %v1367 = vperm.slane %v957, 5
        %v1368 = vadd.f32 %v1366, %v1367
        %v1369 = vpack.c.bf16 %v1368, %v1368
        %s1370 = scalar_lea.vmem %s4, 16
        %v1371 = vld [vmem:[%s1370] sm:$0xf]
        %v1372 = vld [vmem:[%s1370 + $0x4] sm:$0xf]
        %v1373 = vld [vmem:[%s1370 + $0x8] sm:$0xf]
        %v1374 = vld [vmem:[%s1370 + $0xc] sm:$0xf]
        %s1375 = scalar_lea.vmem %s7, 1
        %v1376 = vld [vmem:[%s1375] sm:$0x1]
        %v1378 = vperm.slane %v1376, 0
        %v1384 = vunpack.c.l.b16 %v1371
        %v1385 = vunpack.c.l.b16 %v1372
        %v1386 = vunpack.c.l.b16 %v1373
        %v1387 = vunpack.c.l.b16 %v1374
        %v1388 = vpack.c.b16 %v1385, %v1384
        %v1389 = vpack.c.b16 %v1387, %v1386
        %v1393 = vsel %vm400, %v1369, 0
        %1395 = vmatpush.bf16.msra.mxu0 0
        %1396 = vmatpush.bf16.msra.mxu0 0
        %1397 = vmatpush.bf16.msra.mxu0 0
        %1398 = vmatpush.bf16.msra.mxu0 0
        %1399 = vmatpush.bf16.msra.mxu0 0
        %1400 = vmatpush.bf16.msra.mxu0 0
        %1401 = vmatpush.bf16.msra.mxu0 %v1389
        %1402 = vmatpush.bf16.msra.mxu0 %v1388
        %1403 = vmatmul.bf16.gmra.mxu0 %v1393
        %v1404 = vpop.f32.mrf.mxu0
        %v1405 = vadd.f32 %v1378, %v1404
        %v1406 = vpop.f32.mrf.mxu0
        %1407 = vdwg.mxu0
        %v1408 = vmax.f32 %v1405, 0.0
        %v1409 = vpack.c.bf16 %v1408, %v1408
        %s1410 = scalar_lea.vmem %s5, 32
        %v1411 = vld [vmem:[%s1410] sm:$0xf]
        %v1412 = vld [vmem:[%s1410 + $0x4] sm:$0xf]
        %v1413 = vld [vmem:[%s1410 + $0x8] sm:$0xf]
        %v1414 = vld [vmem:[%s1410 + $0xc] sm:$0xf]
        %v1415 = vld [vmem:[%s1410 + $0x10] sm:$0xf]
        %v1416 = vld [vmem:[%s1410 + $0x14] sm:$0xf]
        %v1417 = vld [vmem:[%s1410 + $0x18] sm:$0xf]
        %v1418 = vld [vmem:[%s1410 + $0x1c] sm:$0xf]
        %v1419 = vperm.slane %v957, 6
        %v1428 = vunpack.c.l.b16 %v1411
        %v1429 = vunpack.c.l.b16 %v1412
        %v1430 = vunpack.c.l.b16 %v1413
        %v1431 = vunpack.c.l.b16 %v1414
        %v1432 = vunpack.c.l.b16 %v1415
        %v1433 = vunpack.c.l.b16 %v1416
        %v1434 = vunpack.c.l.b16 %v1417
        %v1435 = vunpack.c.l.b16 %v1418
        %v1436 = vpack.c.b16 %v1429, %v1428
        %v1437 = vpack.c.b16 %v1431, %v1430
        %v1438 = vpack.c.b16 %v1433, %v1432
        %v1439 = vpack.c.b16 %v1435, %v1434
        %v1445 = vsel %vm912, %v1409, 0
        %1447 = vmatpush.bf16.msra.mxu0 0
        %1448 = vmatpush.bf16.msra.mxu0 0
        %1449 = vmatpush.bf16.msra.mxu0 0
        %1450 = vmatpush.bf16.msra.mxu0 0
        %1451 = vmatpush.bf16.msra.mxu0 %v1439
        %1452 = vmatpush.bf16.msra.mxu0 %v1438
        %1453 = vmatpush.bf16.msra.mxu0 %v1437
        %1454 = vmatpush.bf16.msra.mxu0 %v1436
        %1455 = vmatmul.bf16.gmra.mxu0 %v1445
        %v1456 = vpop.f32.mrf.mxu0
        %v1457 = vadd.f32 %v1419, %v1456
        %v1458 = vpop.f32.mrf.mxu0
        %1459 = vdwg.mxu0
        %v1460 = vadd.f32 %v1368, %v1457
        %v1461 = vsel %vm400, %v1460, 0.0
        %1462 = vadd.xlane.f32.xlu0 %v1461
        %v1463 = vpop.xlane.xlu0 %1462
        %v1464 = vmul.f32 %v1463, %v816
        %v1465 = vsub.f32 %v1460, %v1464
        %v1466 = vmul.f32 %v1465, %v1465
        %v1467 = vsel %vm400, %v1466, 0.0
        %1468 = vadd.xlane.f32.xlu0 %v1467
        %v1469 = vpop.xlane.xlu0 %1468
        %v1470 = vmul.f32 %v1469, %v816
        %v1471 = vadd.f32 %v1470, 1e-05
        %v1472 = vrsqrt.pop %v1471
        %v1473 = vmul.f32 %v1472, %v1471
        %v1474 = vmul.f32 %v1473, %v1472
        %v1475 = vmul.f32 0.5, %v1474
        %v1476 = vsub.f32 1.5, %v1475
        %v1477 = vmul.f32 %v1472, %v1476
        %vm1478 = vweird.f32 %v1471
        %vm1479 = vweird.f32 %v1472
        %vm1480 = vmor %vm1478, %vm1479
        %v1481 = vsel %vm1480, %v1472, %v1477
        %v1482 = vmul.f32 %v1465, %v1481
        %v1483 = vperm.slane %v957, 7
        %v1484 = vmul.f32 %v1482, %v1483
        %v1485 = vperm.slane %v958, 0
        %v1486 = vadd.f32 %v1484, %v1485
        %v1487 = vpack.c.bf16 %v1486, %v1486
        %v1488 = vld [vmem:[%s8] sm:$0xf]
        %v1489 = vld [vmem:[%s8 + $0x4] sm:$0xf]
        %v1490 = vld [vmem:[%s8 + $0x8] sm:$0xf]
        %v1491 = vld [vmem:[%s8 + $0xc] sm:$0xf]
        %v1492 = vld [vmem:[%s9] sm:$0x1]
        %v1494 = vperm.slane %v1492, 0
        %v1500 = vunpack.c.l.b16 %v1488
        %v1501 = vunpack.c.l.b16 %v1489
        %v1502 = vunpack.c.l.b16 %v1490
        %v1503 = vunpack.c.l.b16 %v1491
        %v1504 = vpack.c.b16 %v1501, %v1500
        %v1505 = vpack.c.b16 %v1503, %v1502
        %v1509 = vsel %vm400, %v1487, 0
        %1511 = vmatpush.bf16.msra.mxu0 0
        %1512 = vmatpush.bf16.msra.mxu0 0
        %1513 = vmatpush.bf16.msra.mxu0 0
        %1514 = vmatpush.bf16.msra.mxu0 0
        %1515 = vmatpush.bf16.msra.mxu0 0
        %1516 = vmatpush.bf16.msra.mxu0 0
        %1517 = vmatpush.bf16.msra.mxu0 %v1505
        %1518 = vmatpush.bf16.msra.mxu0 %v1504
        %1519 = vmatmul.bf16.gmra.mxu0 %v1509
        %v1520 = vpop.f32.mrf.mxu0
        %v1521 = vadd.f32 %v1494, %v1520
        %v1522 = vpop.f32.mrf.mxu0
        %1523 = vdwg.mxu0
        %1524 = vst [vmem:[%s371] sm:$0xff] %v1521
        %p1525 = scmp.lt.s32.totalorder %s22, 1
        %s1526 = scalar_select %p1525, %s22, 1
        %s1527 = smul.addr %s1526, 8
        %s1528 = scalar_lea.vmem %s10, %s1527
        // Predicated region
        $region65: #{model_forward.1} parent=59 // pred_check
          %p1529 = pneg %p255
        $region66: #{model_forward.1} parent=59 // pred_check_branch
          %1531 = sbr.rel (%p1529) target = $region68
        $region67: #{model_forward.1} parent=59 // pred_region
          _
        $region68: #{model_forward.1} parent=59 // pred_fallthru
          _
      $region60: #{model_forward.1} parent=5 // pred_fallthru
        _
      %p1532 = scmp.le.s32.totalorder 2, %s17
      // Predicated region
      $region69: #{model_forward.1} parent=5 // pred_check
        %p1533 = pneg %p1532
      $region70: #{model_forward.1} parent=5 // pred_check_branch
        %1535 = sbr.rel (%p1533) target = $region72
      $region71: #{model_forward.1} parent=5 // pred_region
        %s1536 = ssub.s32 %s17, 2
        // Predicated region
        $region73: #{model_forward.1} parent=71 // pred_check
          %p1537 = pneg %p261
        $region74: #{model_forward.1} parent=71 // pred_check_branch
          %1539 = sbr.rel (%p1537) target = $region76
        $region75: #{model_forward.1} parent=71 // pred_region
          %p1540 = scmp.lt.s32.totalorder %s23, 1
          %s1541 = scalar_select %p1540, %s23, 1
          %s1542 = smul.addr %s1541, 8
          %s1543 = scalar_lea.vmem %s10, %s1542
        $region76: #{model_forward.1} parent=71 // pred_fallthru
          _
      $region72: #{model_forward.1} parent=5 // pred_fallthru
        _
    $region6: #{model_forward.1} parent=1 // loop_footer
      %s21 = sadd.s32 1, %s17
    $region7: #{model_forward.1} parent=1 // loop_footer_branch
      %16 = sbr.rel target = $region3
    $region8: #{model_forward.1} parent=1 // loop_exit
      _
    %1544 = vsyncpa [#allocation4], 1
    %s1545 = scalar_lea.sflag [#allocation4], 1
    %1546 = vsyncpa %s1545, 1

</llo_original>
